<compile_context>
chip_gen: v7x
topology: tpu7x:2x2x1
jax: 0.10.0
libtpu: 0.0.40
codegen_flags: <defaults>
</compile_context>

<pallas_src>
import math

import numpy as np
import jax
import jax.numpy as jnp
from jax.experimental import pallas as pl
from jax.experimental.pallas import tpu as pltpu

LN_EPS = 1e-5
BN_EPS = 1e-5
LEAKY_SLOPE = 0.2
SQRT_HALF = 0.7071067811865476
HIGHEST = jax.lax.Precision.HIGHEST


# ----------------------------- kernel helpers -------------------------------
def _layernorm(x, gamma, beta):
    # single-pass statistics: var = E[x^2] - mu^2
    mu = jnp.mean(x, axis=-1, keepdims=True)
    ms = jnp.mean(x * x, axis=-1, keepdims=True)
    var = ms - mu * mu
    return (x - mu) * jax.lax.rsqrt(var + LN_EPS) * gamma + beta


def _leaky(x):
    return jnp.where(x > 0, x, LEAKY_SLOPE * x)


def _gelu(x):  # exact (erf) GELU, matching nn.GELU() default numerics
    return 0.5 * x * (1.0 + jax.lax.erf(x * SQRT_HALF))


# ------------------------------ Pallas kernel -------------------------------
def encoder_lcm_kernel(x_ref, pos_ref, idx_ref,
                       g1_ref, b1_ref, w1_ref, bias1_ref,
                       w2_ref, bias2_ref, g2_ref, b2_ref,
                       wf1_ref, bf1_ref, wf2_ref, bf2_ref,
                       o_ref):
    d = pl.program_id(1)

    # The running activation lives in the VMEM-resident output block (same
    # block index for the whole depth sweep of a batch element); seed it with
    # the encoder input on the first block.
    @pl.when(d == 0)
    def _():
        o_ref[0] = x_ref[0]

    x0 = o_ref[0] + pos_ref[0]                                    # (N, C) f32
    n_pts = x0.shape[0]

    # ---------------- LAL branch (graph feature + fused 1x1 convs) ----------
    h = _layernorm(x0, g1_ref[d], b1_ref[d])                      # norm1
    hb = h.astype(jnp.bfloat16)
    # conv1 acts on concat(h_nbr - h_self, h_self); split linearly and fuse:
    #   out = (s1*W1a) @ h_nbr + (s1*(W1b - W1a)) @ h_self + bn1_shift
    t = jnp.dot(hb, w1_ref[d], preferred_element_type=jnp.float32)  # (N, 2*Hp)
    hid_pad = t.shape[1] // 2
    a_gath = t[:, :hid_pad].astype(jnp.bfloat16)  # neighbor term (gathered below)
    b_self = t[:, hid_pad:] + bias1_ref[d]        # self term + folded BN shift

    # Neighbor gather + K-max, chunked: for each row tile and each neighbor k,
    # build a (ROW, N) 0/1 mask (exact in bf16), matmul against a_gath and
    # fold straight into a running max.  Applying LeakyReLU AFTER the max is
    # valid because LeakyReLU is monotone and the self/bias term is constant
    # in k.  This keeps gather scratch at O(ROW*N) instead of O(K*N*N).
    idx_all = idx_ref[0]                                           # (N, K) i32
    n_k = idx_all.shape[1]
    row_tile = n_pts if n_pts <= 512 else 256

    parts = []
    for r0 in range(0, n_pts, row_tile):
        rows = min(row_tile, n_pts - r0)
        col = jax.lax.broadcasted_iota(jnp.int32, (rows, n_pts), 1)
        idx_chunk = idx_all[r0:r0 + rows, :]                       # (rows, K)
        acc = None
        for k in range(n_k):
            onehot = (idx_chunk[:, k:k + 1] == col).astype(jnp.bfloat16)
            gk = jnp.dot(onehot, a_gath,
                         preferred_element_type=jnp.float32)       # (rows, Hp)
            acc = gk if acc is None else jnp.maximum(acc, gk)
        parts.append(acc)
    vmax = parts[0] if len(parts) == 1 else jnp.concatenate(parts, axis=0)

    x1 = _leaky(vmax + b_self)                                     # conv1+BN+LeakyReLU
    z = _leaky(jnp.dot(x1.astype(jnp.bfloat16), w2_ref[d],
                       preferred_element_type=jnp.float32)
               + bias2_ref[d])                                     # conv2+BN+LeakyReLU
    xa = x0 + z                                                    # residual

    # ------------------------------ MLP branch ------------------------------
    h2 = _layernorm(xa, g2_ref[d], b2_ref[d])                      # norm2
    m = _gelu(jnp.dot(h2.astype(jnp.bfloat16), wf1_ref[d],
                      preferred_element_type=jnp.float32) + bf1_ref[d])
    m = jnp.dot(m.astype(jnp.bfloat16), wf2_ref[d],
                preferred_element_type=jnp.float32) + bf2_ref[d]
    o_ref[0] = xa + m                                              # residual


# --------------------------- parameter handling -----------------------------
def init_block_params(key, dim, downrate):
    hid = int(dim / downrate)
    ks = jax.random.split(key, 14)

    def rnd(k, shape, scale):
        return (scale * jax.random.normal(k, shape)).astype(jnp.float32)

    p = {}
    # LayerNorms
    p['ln1_g'] = 1.0 + rnd(ks[0], (dim,), 0.05)
    p['ln1_b'] = rnd(ks[1], (dim,), 0.05)
    p['ln2_g'] = 1.0 + rnd(ks[2], (dim,), 0.05)
    p['ln2_b'] = rnd(ks[3], (dim,), 0.05)
    # LAL conv1: Conv2d(2*dim -> hid, 1x1, bias=False) + BatchNorm2d(hid)
    p['conv1_w'] = rnd(ks[4], (hid, 2 * dim), 1.0 / math.sqrt(2 * dim))
    p['bn1_g'] = 1.0 + rnd(ks[5], (hid,), 0.05)
    p['bn1_b'] = rnd(ks[6], (hid,), 0.05)
    # LAL conv2: Conv1d(hid -> dim, 1, bias=False) + BatchNorm1d(dim)
    p['conv2_w'] = rnd(ks[7], (dim, hid), 1.0 / math.sqrt(hid))
    p['bn2_g'] = 1.0 + rnd(ks[8], (dim,), 0.05)
    p['bn2_b'] = rnd(ks[9], (dim,), 0.05)
    # MLP: Linear(dim->hid), Linear(hid->dim)
    p['fc1_w'] = rnd(ks[10], (hid, dim), 1.0 / math.sqrt(dim))
    p['fc1_b'] = rnd(ks[11], (hid,), 0.05)
    p['fc2_w'] = rnd(ks[12], (dim, hid), 1.0 / math.sqrt(hid))
    p['fc2_b'] = rnd(ks[13], (dim,), 0.05)
    return p


PARAM_ORDER = ('g1', 'b1', 'w1', 'bias1', 'w2', 'bias2',
               'g2', 'b2', 'wf1', 'bf1', 'wf2', 'bf2')


def fold_block_params(p):
    """Fold inference-mode BN into weights, fuse conv1 halves, pad hid to 128,
    and cast matmul weights to bf16 (biases / LN params stay f32)."""
    dim = p['conv2_w'].shape[0]
    hid = p['conv1_w'].shape[0]
    hid_pad = -(-hid // 128) * 128                    # round up to multiple of 128
    s1 = p['bn1_g'] / jnp.sqrt(1.0 + BN_EPS)
    s2 = p['bn2_g'] / jnp.sqrt(1.0 + BN_EPS)
    w1a = (s1[:, None] * p['conv1_w'][:, :dim]).T     # (dim, hid): neighbor term
    w1b = (s1[:, None] * p['conv1_w'][:, dim:]).T     # (dim, hid): self term
    w1d = w1b - w1a

    def pad_cols(a):
        return jnp.pad(a, ((0, 0), (0, hid_pad - a.shape[1])))

    def pad_rows(a):
        return jnp.pad(a, ((0, hid_pad - a.shape[0]), (0, 0)))

    def pad_vec(v):
        return jnp.pad(v, (0, hid_pad - v.shape[0]))

    return dict(
        g1=p['ln1_g'][None, :].astype(jnp.float32),
        b1=p['ln1_b'][None, :].astype(jnp.float32),
        # fused conv1 weight: [:, :hid_pad] -> neighbor (gathered) term,
        #                     [:, hid_pad:] -> self term (W1b - W1a)
        w1=jnp.concatenate([pad_cols(w1a), pad_cols(w1d)],
                           axis=1).astype(jnp.bfloat16),           # (dim, 2*Hp)
        bias1=pad_vec(p['bn1_b'])[None, :].astype(jnp.float32),    # (1, Hp)
        w2=pad_rows((s2[:, None] * p['conv2_w']).T).astype(jnp.bfloat16),  # (Hp, dim)
        bias2=p['bn2_b'][None, :].astype(jnp.float32),             # (1, dim)
        g2=p['ln2_g'][None, :].astype(jnp.float32),
        b2=p['ln2_b'][None, :].astype(jnp.float32),
        wf1=pad_cols(p['fc1_w'].T).astype(jnp.bfloat16),           # (dim, Hp)
        bf1=pad_vec(p['fc1_b'])[None, :].astype(jnp.float32),      # (1, Hp)
        wf2=pad_rows(p['fc2_w'].T).astype(jnp.bfloat16),           # (Hp, dim)
        bf2=p['fc2_b'][None, :].astype(jnp.float32),               # (1, dim)
    )


def stack_block_params(params_list):
    folded = [fold_block_params(p) for p in params_list]
    return {k: jnp.stack([f[k] for f in folded], axis=0) for k in PARAM_ORDER}


# --------------------------- budgeting / cost hints --------------------------
def _vmem_cap_bytes():
    """~80% of this generation's physical VMEM (headroom for Mosaic scratch)."""
    cap = None
    try:
        info = pltpu.get_tpu_info()
        cap = getattr(info, "vmem_capacity_bytes", None)
    except Exception:
        cap = None
    if not cap:
        cap = 64 * 1024 * 1024          # conservative fallback (v7x physical)
    return int(cap * 0.8)


def _vmem_limit_bytes(N, C, K, hid_pad, plist):
    f32 = 4
    act = N * C * f32
    idx_tile = N * max(K, 128) * f32                  # lane-padded idx tile
    weights = sum(int(np.prod(a.shape)) * a.dtype.itemsize for a in plist)
    row = N if N <= 512 else 256
    scratch = (row * N * (2 + 4)                      # per-chunk one-hot (bf16) + iota (i32)
               + N * 2 * hid_pad * f32                # fused conv1 output
               + 2 * row * hid_pad * f32              # per-chunk gather / running max
               + 6 * N * hid_pad * f32                # hid-wide temporaries
               + 10 * act)                            # C-wide temporaries
    # double-buffered x/pos/idx tiles + resident output block + resident
    # (full-depth) weight stack + in-kernel temporaries; 2x safety margin.
    total = 2 * (2 * act + idx_tile) + 2 * act + 2 * weights + scratch
    need = 2 * total
    return int(min(max(need, 16 * 1024 * 1024), _vmem_cap_bytes()))


def _cost_estimate(B, N, C, K, hid_pad, depth, plist):
    per_block = (2 * N * C * (2 * hid_pad)            # conv1 (fused halves)
                 + 2 * K * N * N * hid_pad            # one-hot gather matmuls
                 + 2 * N * hid_pad * C                # conv2
                 + 2 * N * C * hid_pad                # fc1
                 + 2 * N * hid_pad * C)               # fc2
    flops = B * depth * per_block
    transcendentals = B * depth * N * (hid_pad + 4)   # erf(GELU) + 2 LN rsqrt
    bytes_accessed = (B * (3 * N * C + N * K) * 4
                      + sum(int(np.prod(a.shape)) * a.dtype.itemsize for a in plist))
    return pl.CostEstimate(flops=int(flops),
                           transcendentals=int(transcendentals),
                           bytes_accessed=int(bytes_accessed))


# ------------------------------ Pallas wrapper -------------------------------
def encoder_lcm_forward(x, pos, idx, block_params_list):
    """EncoderLCM.forward: x = block(x + pos, idx) for each block, fused into a
    single pallas_call with grid=(B, depth)."""
    B, N, C = x.shape
    K = idx.shape[-1]
    depth = len(block_params_list)
    stacked = stack_block_params(block_params_list)
    plist = [stacked[k] for k in PARAM_ORDER]
    hid_pad = stacked['bias1'].shape[-1]

    idx = idx.astype(jnp.int32)          # (B, N, K), K on lanes (lane-dense)

    def act_spec():
        return pl.BlockSpec((1, N, C), lambda b, d: (b, 0, 0))

    in_specs = [act_spec(), act_spec(),
                pl.BlockSpec((1, N, K), lambda b, d: (b, 0, 0))]
    # Full-depth weight stacks with a constant index_map: fetched once per
    # pallas_call, VMEM-resident for the whole grid; the kernel indexes the
    # depth axis with pl.program_id(1).
    in_specs += [pl.BlockSpec(a.shape, lambda b, d: (0, 0, 0)) for a in plist]

    return pl.pallas_call(
        encoder_lcm_kernel,
        out_shape=jax.ShapeDtypeStruct((B, N, C), jnp.float32),
        grid_spec=pltpu.PrefetchScalarGridSpec(
            num_scalar_prefetch=0,
            grid=(B, depth),                 # depth is innermost (sequential)
            in_specs=in_specs,
            out_specs=act_spec(),
        ),
        compiler_params=pltpu.CompilerParams(
            dimension_semantics=("parallel", "arbitrary"),
            vmem_limit_bytes=_vmem_limit_bytes(N, C, K, hid_pad, plist),
        ),
        cost_estimate=_cost_estimate(B, N, C, K, hid_pad, depth, plist),
    )(x, pos, idx, *plist)


# ---------------------------- pure-JAX reference -----------------------------
def _ref_layernorm(x, g, b):
    mu = jnp.mean(x, axis=-1, keepdims=True)
    var = jnp.mean((x - mu) ** 2, axis=-1, keepdims=True)
    return (x - mu) / jnp.sqrt(var + LN_EPS) * g + b


def ref_block(x, pos, idx, p):
    x0 = x + pos
    h = _ref_layernorm(x0, p['ln1_g'], p['ln1_b'])
    gathered = jax.vmap(lambda hb, ib: hb[ib])(h, idx)           # (B, N, K, C)
    self_feat = jnp.broadcast_to(h[:, :, None, :], gathered.shape)
    feat = jnp.concatenate([gathered - self_feat, self_feat], axis=-1)
    y = jnp.einsum('bnkc,dc->bnkd', feat, p['conv1_w'], precision=HIGHEST)
    y = y * (p['bn1_g'] / jnp.sqrt(1.0 + BN_EPS)) + p['bn1_b']
    y = jnp.where(y > 0, y, LEAKY_SLOPE * y)
    x1 = y.max(axis=2)                                           # (B, N, hid)
    z = jnp.einsum('bnd,cd->bnc', x1, p['conv2_w'], precision=HIGHEST)
    z = z * (p['bn2_g'] / jnp.sqrt(1.0 + BN_EPS)) + p['bn2_b']
    z = jnp.where(z > 0, z, LEAKY_SLOPE * z)
    xa = x0 + z
    h2 = _ref_layernorm(xa, p['ln2_g'], p['ln2_b'])
    m = jnp.einsum('bnc,hc->bnh', h2, p['fc1_w'], precision=HIGHEST) + p['fc1_b']
    m = 0.5 * m * (1.0 + jax.lax.erf(m * SQRT_HALF))
    m = jnp.einsum('bnh,ch->bnc', m, p['fc2_w'], precision=HIGHEST) + p['fc2_b']
    return xa + m


def ref_encoder(x, pos, idx, block_params_list):
    for p in block_params_list:
        x = ref_block(x, pos, idx, p)
    return x


# ----------------------------------- main ------------------------------------
if __name__ == "__main__":
    B, N, C = 2, 16, 32        # batch, num points (seq), embed_dim
    K = 4                      # gcn_k (precomputed neighbor idx provided)
    depth = 2
    downrate = 8

    key = jax.random.PRNGKey(0)
    kx, kp, ki, kb = jax.random.split(key, 4)
    x = jax.random.normal(kx, (B, N, C), dtype=jnp.float32)
    pos = jax.random.normal(kp, (B, N, C), dtype=jnp.float32)
    idx = jax.random.randint(ki, (B, N, K), 0, N, dtype=jnp.int32)

    block_keys = jax.random.split(kb, depth)
    params = [init_block_params(block_keys[i], C, downrate) for i in range(depth)]

    out = encoder_lcm_forward(x, pos, idx, params)
    out = jax.block_until_ready(out)

    ref = ref_encoder(x, pos, idx, params)
    # Kernel uses bf16 matmul inputs with f32 accumulation vs. an f32 HIGHEST
    # reference, so allow ~5e-2 tolerance.
    np.testing.assert_allclose(np.asarray(out), np.asarray(ref), rtol=5e-2, atol=5e-2)
    print("KERNEL_OK")
</pallas_src>

<mosaic_0001>
module attributes {stable_mosaic.version = 11 : i64} {
  func.func @encoder_lcm_kernel(%arg0: i32, %arg1: i32, %arg2: memref<1x16x32xf32, #tpu.memory_space<vmem>>, %arg3: memref<1x16x32xf32, #tpu.memory_space<vmem>>, %arg4: memref<1x16x4xi32, #tpu.memory_space<vmem>>, %arg5: memref<2x1x32xf32, #tpu.memory_space<vmem>>, %arg6: memref<2x1x32xf32, #tpu.memory_space<vmem>>, %arg7: memref<2x32x256xbf16, #tpu.memory_space<vmem>>, %arg8: memref<2x1x128xf32, #tpu.memory_space<vmem>>, %arg9: memref<2x128x32xbf16, #tpu.memory_space<vmem>>, %arg10: memref<2x1x32xf32, #tpu.memory_space<vmem>>, %arg11: memref<2x1x32xf32, #tpu.memory_space<vmem>>, %arg12: memref<2x1x32xf32, #tpu.memory_space<vmem>>, %arg13: memref<2x32x128xbf16, #tpu.memory_space<vmem>>, %arg14: memref<2x1x128xf32, #tpu.memory_space<vmem>>, %arg15: memref<2x128x32xbf16, #tpu.memory_space<vmem>>, %arg16: memref<2x1x32xf32, #tpu.memory_space<vmem>>, %arg17: memref<1x16x32xf32, #tpu.memory_space<vmem>>) attributes {dimension_semantics = [#tpu.dimension_semantics<parallel>, #tpu.dimension_semantics<arbitrary>], iteration_bounds = array<i64: 2, 2>, scalar_prefetch = 0 : i64, scratch_operands = 0 : i64, tpu.core_type = #tpu.core_type<tc>, window_params = [{transform_indices = @transform_0, window_bounds = array<i64: 1, 16, 32>}, {transform_indices = @transform_1, window_bounds = array<i64: 1, 16, 32>}, {transform_indices = @transform_2, window_bounds = array<i64: 1, 16, 4>}, {pipeline_mode = #tpu.pipeline_mode<synchronous>, transform_indices = @transform_3, window_bounds = array<i64: 2, 1, 32>}, {pipeline_mode = #tpu.pipeline_mode<synchronous>, transform_indices = @transform_4, window_bounds = array<i64: 2, 1, 32>}, {pipeline_mode = #tpu.pipeline_mode<synchronous>, transform_indices = @transform_5, window_bounds = array<i64: 2, 32, 256>}, {pipeline_mode = #tpu.pipeline_mode<synchronous>, transform_indices = @transform_6, window_bounds = array<i64: 2, 1, 128>}, {pipeline_mode = #tpu.pipeline_mode<synchronous>, transform_indices = @transform_7, window_bounds = array<i64: 2, 128, 32>}, {pipeline_mode = #tpu.pipeline_mode<synchronous>, transform_indices = @transform_8, window_bounds = array<i64: 2, 1, 32>}, {pipeline_mode = #tpu.pipeline_mode<synchronous>, transform_indices = @transform_9, window_bounds = array<i64: 2, 1, 32>}, {pipeline_mode = #tpu.pipeline_mode<synchronous>, transform_indices = @transform_10, window_bounds = array<i64: 2, 1, 32>}, {pipeline_mode = #tpu.pipeline_mode<synchronous>, transform_indices = @transform_11, window_bounds = array<i64: 2, 32, 128>}, {pipeline_mode = #tpu.pipeline_mode<synchronous>, transform_indices = @transform_12, window_bounds = array<i64: 2, 1, 128>}, {pipeline_mode = #tpu.pipeline_mode<synchronous>, transform_indices = @transform_13, window_bounds = array<i64: 2, 128, 32>}, {pipeline_mode = #tpu.pipeline_mode<synchronous>, transform_indices = @transform_14, window_bounds = array<i64: 2, 1, 32>}, {transform_indices = @transform_15, window_bounds = array<i64: 1, 16, 32>}]} {
    %c0_i32 = arith.constant 0 : i32
    %0 = arith.cmpi eq, %arg1, %c0_i32 : i32
    %1 = arith.extui %0 : i1 to i32
    %c0_i32_0 = arith.constant 0 : i32
    %2 = arith.cmpi ne, %1, %c0_i32_0 : i32
    scf.if %2 {
      %c0_60 = arith.constant 0 : index
      %c0_61 = arith.constant 0 : index
      %c0_62 = arith.constant 0 : index
      %165 = vector.load %arg2[%c0_60, %c0_61, %c0_62] : memref<1x16x32xf32, #tpu.memory_space<vmem>>, vector<1x16x32xf32>
      %166 = vector.shape_cast %165 : vector<1x16x32xf32> to vector<16x32xf32>
      %c0_63 = arith.constant 0 : index
      %c0_64 = arith.constant 0 : index
      %c0_65 = arith.constant 0 : index
      %167 = vector.load %arg17[%c0_63, %c0_64, %c0_65] : memref<1x16x32xf32, #tpu.memory_space<vmem>>, vector<1x16x32xf32>
      %168 = vector.shape_cast %167 : vector<1x16x32xf32> to vector<16x32xf32>
      %169 = vector.shape_cast %166 : vector<16x32xf32> to vector<1x16x32xf32>
      tpu.vector_store %arg17[%c0_63, %c0_64, %c0_65], %169 {strides = array<i32>} : memref<1x16x32xf32, #tpu.memory_space<vmem>>, vector<1x16x32xf32>,
    } else {
    }
    %c0 = arith.constant 0 : index
    %c0_1 = arith.constant 0 : index
    %c0_2 = arith.constant 0 : index
    %3 = vector.load %arg17[%c0, %c0_1, %c0_2] : memref<1x16x32xf32, #tpu.memory_space<vmem>>, vector<1x16x32xf32>
    %4 = vector.shape_cast %3 : vector<1x16x32xf32> to vector<16x32xf32>
    %c0_3 = arith.constant 0 : index
    %c0_4 = arith.constant 0 : index
    %c0_5 = arith.constant 0 : index
    %5 = vector.load %arg3[%c0_3, %c0_4, %c0_5] : memref<1x16x32xf32, #tpu.memory_space<vmem>>, vector<1x16x32xf32>
    %6 = vector.shape_cast %5 : vector<1x16x32xf32> to vector<16x32xf32>
    %7 = arith.addf %4, %6 : vector<16x32xf32>
    %8 = arith.index_cast %arg1 : i32 to index
    %c0_6 = arith.constant 0 : index
    %c0_7 = arith.constant 0 : index
    %9 = vector.load %arg5[%8, %c0_6, %c0_7] : memref<2x1x32xf32, #tpu.memory_space<vmem>>, vector<1x1x32xf32>
    %10 = vector.shape_cast %9 : vector<1x1x32xf32> to vector<1x32xf32>
    %11 = arith.index_cast %arg1 : i32 to index
    %c0_8 = arith.constant 0 : index
    %c0_9 = arith.constant 0 : index
    %12 = vector.load %arg6[%11, %c0_8, %c0_9] : memref<2x1x32xf32, #tpu.memory_space<vmem>>, vector<1x1x32xf32>
    %13 = vector.shape_cast %12 : vector<1x1x32xf32> to vector<1x32xf32>
    %cst = arith.constant dense<0.000000e+00> : vector<16xf32>
    %14 = vector.multi_reduction <add>, %7, %cst [1] : vector<16x32xf32> to vector<16xf32>
    %15 = vector.shape_cast %14 : vector<16xf32> to vector<16x1xf32>
    %cst_10 = arith.constant 3.200000e+01 : f32
    %16 = vector.broadcast %cst_10 : f32 to vector<16x1xf32>
    %17 = arith.divf %15, %16 : vector<16x1xf32>
    %18 = arith.mulf %7, %7 : vector<16x32xf32>
    %cst_11 = arith.constant dense<0.000000e+00> : vector<16xf32>
    %19 = vector.multi_reduction <add>, %18, %cst_11 [1] : vector<16x32xf32> to vector<16xf32>
    %20 = vector.shape_cast %19 : vector<16xf32> to vector<16x1xf32>
    %cst_12 = arith.constant 3.200000e+01 : f32
    %21 = vector.broadcast %cst_12 : f32 to vector<16x1xf32>
    %22 = arith.divf %20, %21 : vector<16x1xf32>
    %23 = arith.mulf %17, %17 : vector<16x1xf32>
    %24 = arith.subf %22, %23 : vector<16x1xf32>
    %25 = vector.broadcast %17 : vector<16x1xf32> to vector<16x32xf32>
    %26 = arith.subf %7, %25 : vector<16x32xf32>
    %cst_13 = arith.constant 9.99999974E-6 : f32
    %27 = vector.broadcast %cst_13 : f32 to vector<16x1xf32>
    %28 = arith.addf %24, %27 : vector<16x1xf32>
    %29 = math.rsqrt %28 : vector<16x1xf32>
    %30 = vector.broadcast %29 : vector<16x1xf32> to vector<16x32xf32>
    %31 = arith.mulf %26, %30 : vector<16x32xf32>
    %32 = vector.broadcast %10 : vector<1x32xf32> to vector<16x32xf32>
    %33 = arith.mulf %31, %32 : vector<16x32xf32>
    %34 = vector.broadcast %13 : vector<1x32xf32> to vector<16x32xf32>
    %35 = arith.addf %33, %34 : vector<16x32xf32>
    %36 = arith.truncf %35 : vector<16x32xf32> to vector<16x32xbf16>
    %37 = arith.index_cast %arg1 : i32 to index
    %c0_14 = arith.constant 0 : index
    %c0_15 = arith.constant 0 : index
    %38 = vector.load %arg7[%37, %c0_14, %c0_15] : memref<2x32x256xbf16, #tpu.memory_space<vmem>>, vector<1x32x256xbf16>
    %39 = vector.shape_cast %38 : vector<1x32x256xbf16> to vector<32x256xbf16>
    %cst_16 = arith.constant dense<0.000000e+00> : vector<16x256xf32>
    %40 = tpu.matmul %36, %39, %cst_16 {dimension_numbers = #tpu.dot_dimension_numbers<[1], [0], [0], [1], [0, 0, 1, 1], [], []>} : vector<16x32xbf16>, vector<32x256xbf16>, vector<16x256xf32> -> vector<16x256xf32>
    %41 = vector.extract_strided_slice %40 {offsets = [0, 0], sizes = [16, 128], strides = [1, 1]} : vector<16x256xf32> to vector<16x128xf32>
    %42 = arith.truncf %41 : vector<16x128xf32> to vector<16x128xbf16>
    %43 = vector.extract_strided_slice %40 {offsets = [0, 128], sizes = [16, 128], strides = [1, 1]} : vector<16x256xf32> to vector<16x128xf32>
    %44 = arith.index_cast %arg1 : i32 to index
    %c0_17 = arith.constant 0 : index
    %c0_18 = arith.constant 0 : index
    %45 = vector.load %arg8[%44, %c0_17, %c0_18] : memref<2x1x128xf32, #tpu.memory_space<vmem>>, vector<1x1x128xf32>
    %46 = vector.shape_cast %45 : vector<1x1x128xf32> to vector<1x128xf32>
    %47 = vector.broadcast %46 : vector<1x128xf32> to vector<16x128xf32>
    %48 = arith.addf %43, %47 : vector<16x128xf32>
    %c0_19 = arith.constant 0 : index
    %c0_20 = arith.constant 0 : index
    %c0_21 = arith.constant 0 : index
    %49 = vector.load %arg4[%c0_19, %c0_20, %c0_21] : memref<1x16x4xi32, #tpu.memory_space<vmem>>, vector<1x16x4xi32>
    %50 = vector.shape_cast %49 : vector<1x16x4xi32> to vector<16x4xi32>
    %51 = tpu.iota {dimensions = array<i32: 1>} : vector<16x16xi32>
    %52 = vector.extract_strided_slice %50 {offsets = [0, 0], sizes = [16, 1], strides = [1, 1]} : vector<16x4xi32> to vector<16x1xi32>
    %53 = vector.broadcast %52 : vector<16x1xi32> to vector<16x16xi32>
    %54 = arith.cmpi eq, %53, %51 : vector<16x16xi32>
    %55 = arith.extui %54 : vector<16x16xi1> to vector<16x16xi32>
    %56 = arith.sitofp %55 : vector<16x16xi32> to vector<16x16xf32>
    %57 = arith.truncf %56 : vector<16x16xf32> to vector<16x16xbf16>
    %cst_22 = arith.constant dense<0.000000e+00> : vector<16x128xf32>
    %58 = tpu.matmul %57, %42, %cst_22 {dimension_numbers = #tpu.dot_dimension_numbers<[1], [0], [0], [1], [0, 0, 1, 1], [], []>} : vector<16x16xbf16>, vector<16x128xbf16>, vector<16x128xf32> -> vector<16x128xf32>
    %59 = vector.extract_strided_slice %50 {offsets = [0, 1], sizes = [16, 1], strides = [1, 1]} : vector<16x4xi32> to vector<16x1xi32>
    %60 = vector.broadcast %59 : vector<16x1xi32> to vector<16x16xi32>
    %61 = arith.cmpi eq, %60, %51 : vector<16x16xi32>
    %62 = arith.extui %61 : vector<16x16xi1> to vector<16x16xi32>
    %63 = arith.sitofp %62 : vector<16x16xi32> to vector<16x16xf32>
    %64 = arith.truncf %63 : vector<16x16xf32> to vector<16x16xbf16>
    %cst_23 = arith.constant dense<0.000000e+00> : vector<16x128xf32>
    %65 = tpu.matmul %64, %42, %cst_23 {dimension_numbers = #tpu.dot_dimension_numbers<[1], [0], [0], [1], [0, 0, 1, 1], [], []>} : vector<16x16xbf16>, vector<16x128xbf16>, vector<16x128xf32> -> vector<16x128xf32>
    %66 = arith.maximumf %58, %65 : vector<16x128xf32>
    %67 = vector.extract_strided_slice %50 {offsets = [0, 2], sizes = [16, 1], strides = [1, 1]} : vector<16x4xi32> to vector<16x1xi32>
    %68 = vector.broadcast %67 : vector<16x1xi32> to vector<16x16xi32>
    %69 = arith.cmpi eq, %68, %51 : vector<16x16xi32>
    %70 = arith.extui %69 : vector<16x16xi1> to vector<16x16xi32>
    %71 = arith.sitofp %70 : vector<16x16xi32> to vector<16x16xf32>
    %72 = arith.truncf %71 : vector<16x16xf32> to vector<16x16xbf16>
    %cst_24 = arith.constant dense<0.000000e+00> : vector<16x128xf32>
    %73 = tpu.matmul %72, %42, %cst_24 {dimension_numbers = #tpu.dot_dimension_numbers<[1], [0], [0], [1], [0, 0, 1, 1], [], []>} : vector<16x16xbf16>, vector<16x128xbf16>, vector<16x128xf32> -> vector<16x128xf32>
    %74 = arith.maximumf %66, %73 : vector<16x128xf32>
    %75 = vector.extract_strided_slice %50 {offsets = [0, 3], sizes = [16, 1], strides = [1, 1]} : vector<16x4xi32> to vector<16x1xi32>
    %76 = vector.broadcast %75 : vector<16x1xi32> to vector<16x16xi32>
    %77 = arith.cmpi eq, %76, %51 : vector<16x16xi32>
    %78 = arith.extui %77 : vector<16x16xi1> to vector<16x16xi32>
    %79 = arith.sitofp %78 : vector<16x16xi32> to vector<16x16xf32>
    %80 = arith.truncf %79 : vector<16x16xf32> to vector<16x16xbf16>
    %cst_25 = arith.constant dense<0.000000e+00> : vector<16x128xf32>
    %81 = tpu.matmul %80, %42, %cst_25 {dimension_numbers = #tpu.dot_dimension_numbers<[1], [0], [0], [1], [0, 0, 1, 1], [], []>} : vector<16x16xbf16>, vector<16x128xbf16>, vector<16x128xf32> -> vector<16x128xf32>
    %82 = arith.maximumf %74, %81 : vector<16x128xf32>
    %83 = arith.addf %82, %48 : vector<16x128xf32>
    %cst_26 = arith.constant 0.000000e+00 : f32
    %84 = vector.broadcast %cst_26 : f32 to vector<16x128xf32>
    %85 = arith.cmpf ogt, %83, %84 : vector<16x128xf32>
    %cst_27 = arith.constant 2.000000e-01 : f32
    %86 = vector.broadcast %cst_27 : f32 to vector<16x128xf32>
    %87 = arith.mulf %86, %83 : vector<16x128xf32>
    %88 = arith.select %85, %83, %87 : vector<16x128xi1>, vector<16x128xf32>
    %89 = arith.truncf %88 : vector<16x128xf32> to vector<16x128xbf16>
    %90 = arith.index_cast %arg1 : i32 to index
    %c0_28 = arith.constant 0 : index
    %c0_29 = arith.constant 0 : index
    %91 = vector.load %arg9[%90, %c0_28, %c0_29] : memref<2x128x32xbf16, #tpu.memory_space<vmem>>, vector<1x128x32xbf16>
    %92 = vector.shape_cast %91 : vector<1x128x32xbf16> to vector<128x32xbf16>
    %cst_30 = arith.constant dense<0.000000e+00> : vector<16x32xf32>
    %93 = tpu.matmul %89, %92, %cst_30 {dimension_numbers = #tpu.dot_dimension_numbers<[1], [0], [0], [1], [0, 0, 1, 1], [], []>} : vector<16x128xbf16>, vector<128x32xbf16>, vector<16x32xf32> -> vector<16x32xf32>
    %94 = arith.index_cast %arg1 : i32 to index
    %c0_31 = arith.constant 0 : index
    %c0_32 = arith.constant 0 : index
    %95 = vector.load %arg10[%94, %c0_31, %c0_32] : memref<2x1x32xf32, #tpu.memory_space<vmem>>, vector<1x1x32xf32>
    %96 = vector.shape_cast %95 : vector<1x1x32xf32> to vector<1x32xf32>
    %97 = vector.broadcast %96 : vector<1x32xf32> to vector<16x32xf32>
    %98 = arith.addf %93, %97 : vector<16x32xf32>
    %cst_33 = arith.constant 0.000000e+00 : f32
    %99 = vector.broadcast %cst_33 : f32 to vector<16x32xf32>
    %100 = arith.cmpf ogt, %98, %99 : vector<16x32xf32>
    %cst_34 = arith.constant 2.000000e-01 : f32
    %101 = vector.broadcast %cst_34 : f32 to vector<16x32xf32>
    %102 = arith.mulf %101, %98 : vector<16x32xf32>
    %103 = arith.select %100, %98, %102 : vector<16x32xi1>, vector<16x32xf32>
    %104 = arith.addf %7, %103 : vector<16x32xf32>
    %105 = arith.index_cast %arg1 : i32 to index
    %c0_35 = arith.constant 0 : index
    %c0_36 = arith.constant 0 : index
    %106 = vector.load %arg11[%105, %c0_35, %c0_36] : memref<2x1x32xf32, #tpu.memory_space<vmem>>, vector<1x1x32xf32>
    %107 = vector.shape_cast %106 : vector<1x1x32xf32> to vector<1x32xf32>
    %108 = arith.index_cast %arg1 : i32 to index
    %c0_37 = arith.constant 0 : index
    %c0_38 = arith.constant 0 : index
    %109 = vector.load %arg12[%108, %c0_37, %c0_38] : memref<2x1x32xf32, #tpu.memory_space<vmem>>, vector<1x1x32xf32>
    %110 = vector.shape_cast %109 : vector<1x1x32xf32> to vector<1x32xf32>
    %cst_39 = arith.constant dense<0.000000e+00> : vector<16xf32>
    %111 = vector.multi_reduction <add>, %104, %cst_39 [1] : vector<16x32xf32> to vector<16xf32>
    %112 = vector.shape_cast %111 : vector<16xf32> to vector<16x1xf32>
    %cst_40 = arith.constant 3.200000e+01 : f32
    %113 = vector.broadcast %cst_40 : f32 to vector<16x1xf32>
    %114 = arith.divf %112, %113 : vector<16x1xf32>
    %115 = arith.mulf %104, %104 : vector<16x32xf32>
    %cst_41 = arith.constant dense<0.000000e+00> : vector<16xf32>
    %116 = vector.multi_reduction <add>, %115, %cst_41 [1] : vector<16x32xf32> to vector<16xf32>
    %117 = vector.shape_cast %116 : vector<16xf32> to vector<16x1xf32>
    %cst_42 = arith.constant 3.200000e+01 : f32
    %118 = vector.broadcast %cst_42 : f32 to vector<16x1xf32>
    %119 = arith.divf %117, %118 : vector<16x1xf32>
    %120 = arith.mulf %114, %114 : vector<16x1xf32>
    %121 = arith.subf %119, %120 : vector<16x1xf32>
    %122 = vector.broadcast %114 : vector<16x1xf32> to vector<16x32xf32>
    %123 = arith.subf %104, %122 : vector<16x32xf32>
    %cst_43 = arith.constant 9.99999974E-6 : f32
    %124 = vector.broadcast %cst_43 : f32 to vector<16x1xf32>
    %125 = arith.addf %121, %124 : vector<16x1xf32>
    %126 = math.rsqrt %125 : vector<16x1xf32>
    %127 = vector.broadcast %126 : vector<16x1xf32> to vector<16x32xf32>
    %128 = arith.mulf %123, %127 : vector<16x32xf32>
    %129 = vector.broadcast %107 : vector<1x32xf32> to vector<16x32xf32>
    %130 = arith.mulf %128, %129 : vector<16x32xf32>
    %131 = vector.broadcast %110 : vector<1x32xf32> to vector<16x32xf32>
    %132 = arith.addf %130, %131 : vector<16x32xf32>
    %133 = arith.truncf %132 : vector<16x32xf32> to vector<16x32xbf16>
    %134 = arith.index_cast %arg1 : i32 to index
    %c0_44 = arith.constant 0 : index
    %c0_45 = arith.constant 0 : index
    %135 = vector.load %arg13[%134, %c0_44, %c0_45] : memref<2x32x128xbf16, #tpu.memory_space<vmem>>, vector<1x32x128xbf16>
    %136 = vector.shape_cast %135 : vector<1x32x128xbf16> to vector<32x128xbf16>
    %cst_46 = arith.constant dense<0.000000e+00> : vector<16x128xf32>
    %137 = tpu.matmul %133, %136, %cst_46 {dimension_numbers = #tpu.dot_dimension_numbers<[1], [0], [0], [1], [0, 0, 1, 1], [], []>} : vector<16x32xbf16>, vector<32x128xbf16>, vector<16x128xf32> -> vector<16x128xf32>
    %138 = arith.index_cast %arg1 : i32 to index
    %c0_47 = arith.constant 0 : index
    %c0_48 = arith.constant 0 : index
    %139 = vector.load %arg14[%138, %c0_47, %c0_48] : memref<2x1x128xf32, #tpu.memory_space<vmem>>, vector<1x1x128xf32>
    %140 = vector.shape_cast %139 : vector<1x1x128xf32> to vector<1x128xf32>
    %141 = vector.broadcast %140 : vector<1x128xf32> to vector<16x128xf32>
    %142 = arith.addf %137, %141 : vector<16x128xf32>
    %cst_49 = arith.constant 5.000000e-01 : f32
    %143 = vector.broadcast %cst_49 : f32 to vector<16x128xf32>
    %144 = arith.mulf %143, %142 : vector<16x128xf32>
    %cst_50 = arith.constant 0.707106769 : f32
    %145 = vector.broadcast %cst_50 : f32 to vector<16x128xf32>
    %146 = arith.mulf %142, %145 : vector<16x128xf32>
    %147 = math.erf %146 : vector<16x128xf32>
    %cst_51 = arith.constant 1.000000e+00 : f32
    %148 = vector.broadcast %cst_51 : f32 to vector<16x128xf32>
    %149 = arith.addf %148, %147 : vector<16x128xf32>
    %150 = arith.mulf %144, %149 : vector<16x128xf32>
    %151 = arith.truncf %150 : vector<16x128xf32> to vector<16x128xbf16>
    %152 = arith.index_cast %arg1 : i32 to index
    %c0_52 = arith.constant 0 : index
    %c0_53 = arith.constant 0 : index
    %153 = vector.load %arg15[%152, %c0_52, %c0_53] : memref<2x128x32xbf16, #tpu.memory_space<vmem>>, vector<1x128x32xbf16>
    %154 = vector.shape_cast %153 : vector<1x128x32xbf16> to vector<128x32xbf16>
    %cst_54 = arith.constant dense<0.000000e+00> : vector<16x32xf32>
    %155 = tpu.matmul %151, %154, %cst_54 {dimension_numbers = #tpu.dot_dimension_numbers<[1], [0], [0], [1], [0, 0, 1, 1], [], []>} : vector<16x128xbf16>, vector<128x32xbf16>, vector<16x32xf32> -> vector<16x32xf32>
    %156 = arith.index_cast %arg1 : i32 to index
    %c0_55 = arith.constant 0 : index
    %c0_56 = arith.constant 0 : index
    %157 = vector.load %arg16[%156, %c0_55, %c0_56] : memref<2x1x32xf32, #tpu.memory_space<vmem>>, vector<1x1x32xf32>
    %158 = vector.shape_cast %157 : vector<1x1x32xf32> to vector<1x32xf32>
    %159 = vector.broadcast %158 : vector<1x32xf32> to vector<16x32xf32>
    %160 = arith.addf %155, %159 : vector<16x32xf32>
    %161 = arith.addf %104, %160 : vector<16x32xf32>
    %c0_57 = arith.constant 0 : index
    %c0_58 = arith.constant 0 : index
    %c0_59 = arith.constant 0 : index
    %162 = vector.load %arg17[%c0_57, %c0_58, %c0_59] : memref<1x16x32xf32, #tpu.memory_space<vmem>>, vector<1x16x32xf32>
    %163 = vector.shape_cast %162 : vector<1x16x32xf32> to vector<16x32xf32>
    %164 = vector.shape_cast %161 : vector<16x32xf32> to vector<1x16x32xf32>
    tpu.vector_store %arg17[%c0_57, %c0_58, %c0_59], %164 {strides = array<i32>} : memref<1x16x32xf32, #tpu.memory_space<vmem>>, vector<1x16x32xf32>,
    return
  }
  func.func @transform_0(%arg0: i32, %arg1: i32) -> (i32, i32, i32) {
    %c0_i32 = arith.constant 0 : i32
    %c0_i32_0 = arith.constant 0 : i32
    %c0_i32_1 = arith.constant 0 : i32
    return %arg0, %c0_i32, %c0_i32_0 : i32, i32, i32
  }
  func.func @transform_1(%arg0: i32, %arg1: i32) -> (i32, i32, i32) {
    %c0_i32 = arith.constant 0 : i32
    %c0_i32_0 = arith.constant 0 : i32
    %c0_i32_1 = arith.constant 0 : i32
    return %arg0, %c0_i32, %c0_i32_0 : i32, i32, i32
  }
  func.func @transform_2(%arg0: i32, %arg1: i32) -> (i32, i32, i32) {
    %c0_i32 = arith.constant 0 : i32
    %c0_i32_0 = arith.constant 0 : i32
    %c0_i32_1 = arith.constant 0 : i32
    return %arg0, %c0_i32, %c0_i32_0 : i32, i32, i32
  }
  func.func @transform_3(%arg0: i32, %arg1: i32) -> (i32, i32, i32) {
    %c0_i32 = arith.constant 0 : i32
    %c0_i32_0 = arith.constant 0 : i32
    %c0_i32_1 = arith.constant 0 : i32
    %c0_i32_2 = arith.constant 0 : i32
    return %c0_i32, %c0_i32_0, %c0_i32_1 : i32, i32, i32
  }
  func.func @transform_4(%arg0: i32, %arg1: i32) -> (i32, i32, i32) {
    %c0_i32 = arith.constant 0 : i32
    %c0_i32_0 = arith.constant 0 : i32
    %c0_i32_1 = arith.constant 0 : i32
    %c0_i32_2 = arith.constant 0 : i32
    return %c0_i32, %c0_i32_0, %c0_i32_1 : i32, i32, i32
  }
  func.func @transform_5(%arg0: i32, %arg1: i32) -> (i32, i32, i32) {
    %c0_i32 = arith.constant 0 : i32
    %c0_i32_0 = arith.constant 0 : i32
    %c0_i32_1 = arith.constant 0 : i32
    %c0_i32_2 = arith.constant 0 : i32
    return %c0_i32, %c0_i32_0, %c0_i32_1 : i32, i32, i32
  }
  func.func @transform_6(%arg0: i32, %arg1: i32) -> (i32, i32, i32) {
    %c0_i32 = arith.constant 0 : i32
    %c0_i32_0 = arith.constant 0 : i32
    %c0_i32_1 = arith.constant 0 : i32
    %c0_i32_2 = arith.constant 0 : i32
    return %c0_i32, %c0_i32_0, %c0_i32_1 : i32, i32, i32
  }
  func.func @transform_7(%arg0: i32, %arg1: i32) -> (i32, i32, i32) {
    %c0_i32 = arith.constant 0 : i32
    %c0_i32_0 = arith.constant 0 : i32
    %c0_i32_1 = arith.constant 0 : i32
    %c0_i32_2 = arith.constant 0 : i32
    return %c0_i32, %c0_i32_0, %c0_i32_1 : i32, i32, i32
  }
  func.func @transform_8(%arg0: i32, %arg1: i32) -> (i32, i32, i32) {
    %c0_i32 = arith.constant 0 : i32
    %c0_i32_0 = arith.constant 0 : i32
    %c0_i32_1 = arith.constant 0 : i32
    %c0_i32_2 = arith.constant 0 : i32
    return %c0_i32, %c0_i32_0, %c0_i32_1 : i32, i32, i32
  }
  func.func @transform_9(%arg0: i32, %arg1: i32) -> (i32, i32, i32) {
    %c0_i32 = arith.constant 0 : i32
    %c0_i32_0 = arith.constant 0 : i32
    %c0_i32_1 = arith.constant 0 : i32
    %c0_i32_2 = arith.constant 0 : i32
    return %c0_i32, %c0_i32_0, %c0_i32_1 : i32, i32, i32
  }
  func.func @transform_10(%arg0: i32, %arg1: i32) -> (i32, i32, i32) {
    %c0_i32 = arith.constant 0 : i32
    %c0_i32_0 = arith.constant 0 : i32
    %c0_i32_1 = arith.constant 0 : i32
    %c0_i32_2 = arith.constant 0 : i32
    return %c0_i32, %c0_i32_0, %c0_i32_1 : i32, i32, i32
  }
  func.func @transform_11(%arg0: i32, %arg1: i32) -> (i32, i32, i32) {
    %c0_i32 = arith.constant 0 : i32
    %c0_i32_0 = arith.constant 0 : i32
    %c0_i32_1 = arith.constant 0 : i32
    %c0_i32_2 = arith.constant 0 : i32
    return %c0_i32, %c0_i32_0, %c0_i32_1 : i32, i32, i32
  }
  func.func @transform_12(%arg0: i32, %arg1: i32) -> (i32, i32, i32) {
    %c0_i32 = arith.constant 0 : i32
    %c0_i32_0 = arith.constant 0 : i32
    %c0_i32_1 = arith.constant 0 : i32
    %c0_i32_2 = arith.constant 0 : i32
    return %c0_i32, %c0_i32_0, %c0_i32_1 : i32, i32, i32
  }
  func.func @transform_13(%arg0: i32, %arg1: i32) -> (i32, i32, i32) {
    %c0_i32 = arith.constant 0 : i32
    %c0_i32_0 = arith.constant 0 : i32
    %c0_i32_1 = arith.constant 0 : i32
    %c0_i32_2 = arith.constant 0 : i32
    return %c0_i32, %c0_i32_0, %c0_i32_1 : i32, i32, i32
  }
  func.func @transform_14(%arg0: i32, %arg1: i32) -> (i32, i32, i32) {
    %c0_i32 = arith.constant 0 : i32
    %c0_i32_0 = arith.constant 0 : i32
    %c0_i32_1 = arith.constant 0 : i32
    %c0_i32_2 = arith.constant 0 : i32
    return %c0_i32, %c0_i32_0, %c0_i32_1 : i32, i32, i32
  }
  func.func @transform_15(%arg0: i32, %arg1: i32) -> (i32, i32, i32) {
    %c0_i32 = arith.constant 0 : i32
    %c0_i32_0 = arith.constant 0 : i32
    %c0_i32_1 = arith.constant 0 : i32
    return %arg0, %c0_i32, %c0_i32_0 : i32, i32, i32
  }
}

</mosaic_0001>

<llo_original>
// kernel: tpu_custom_call.1
$region0: #{tpu_custom_call.1}
  #allocation0 [shape = 'u32[]', space=smem, size = 0x4, offset = 0x4, fixed_abs, tag = 'smem constant byte address 0x4 - core index']
  #allocation1 [shape = 'u32[144,128]{1,0:T(1,128)}', space=vmem, size = 0x12000, scoped, tag = 'internal scratch']
  %s0 = inlined_call_operand.vmem [shape: f32[2,16,32], index: 0, kind: input, shape index: {}]
  %s1 = inlined_call_operand.vmem [shape: f32[2,16,32], index: 1, kind: input, shape index: {}]
  %s2 = inlined_call_operand.vmem [shape: s32[2,16,4], index: 2, kind: input, shape index: {}]
  %s3 = inlined_call_operand.vmem [shape: f32[2,1,32], index: 3, kind: input, shape index: {}]
  %s4 = inlined_call_operand.vmem [shape: f32[2,1,32], index: 4, kind: input, shape index: {}]
  %s5 = inlined_call_operand.vmem [shape: bf16[2,32,256], index: 5, kind: input, shape index: {}]
  %s6 = inlined_call_operand.vmem [shape: f32[2,1,128], index: 6, kind: input, shape index: {}]
  %s7 = inlined_call_operand.vmem [shape: bf16[2,128,32], index: 7, kind: input, shape index: {}]
  %s8 = inlined_call_operand.vmem [shape: f32[2,1,32], index: 8, kind: input, shape index: {}]
  %s9 = inlined_call_operand.vmem [shape: f32[2,1,32], index: 9, kind: input, shape index: {}]
  %s10 = inlined_call_operand.vmem [shape: f32[2,1,32], index: 10, kind: input, shape index: {}]
  %s11 = inlined_call_operand.vmem [shape: bf16[2,32,128], index: 11, kind: input, shape index: {}]
  %s12 = inlined_call_operand.vmem [shape: f32[2,1,128], index: 12, kind: input, shape index: {}]
  %s13 = inlined_call_operand.vmem [shape: bf16[2,128,32], index: 13, kind: input, shape index: {}]
  %s14 = inlined_call_operand.vmem [shape: f32[2,1,32], index: 14, kind: input, shape index: {}]
  %s15 = inlined_call_operand.hbm [shape: f32[2,16,32], index: 15, kind: output, shape index: {}]
  %s16 = sld [smem:[#allocation0]]
  $region97: #{tpu_custom_call.1} parent=0
    _
  %s18 = ssub.s32 1, %s16
  %s19 = scalar_select 0, %s18, %s16
  $region1: #{tpu_custom_call.1} parent=0
    #allocation2 [shape = 'u8[16384]{0}', space=vmem, size = 0x4000, scoped, tag = 'output window, operand 0']
    #allocation3 [shape = 's32[2]{0}', space=sflag, size = 0x8, scoped, tag = 'scoped memory for tpu_custom_call.1']
    %20 = vsyncpa [#allocation3], 0
    %s21 = scalar_lea.sflag [#allocation3], 1
    %22 = vsyncpa %s21, 0
    loop: start=0, step=1, limit=6
    $region2: #{tpu_custom_call.1} parent=1 // loop_pre_header
      _
    $region3: #{tpu_custom_call.1} parent=1 // loop_header
      %s24 = sphi 0, %s28
      %p25 = scmp.ge.s32.totalorder %s24, 6
      %s31 = sphi 0, %s43
      %s32 = sphi 0, %s39
      %s33 = sphi 0, %s31
      %s34 = sphi 0, %s32
      %s35 = sphi 0, %s33
      %s36 = sphi 0, %s34
      %s46 = sphi 0, %s48
      %s49 = sphi 0, %s46
      %s50 = sphi 0, %s49
      %s66 = sphi 0, %s50
      %s72 = sphi 0, %s74
      %s75 = sphi 0, %s72
      %s76 = sphi 0, %s75
      %s92 = sphi 0, %s76
      %s98 = sphi 0, %s100
      %s101 = sphi 0, %s98
      %s102 = sphi 0, %s101
      %s118 = sphi 0, %s102
      %s122 = sphi 0, %s122
      %s124 = sphi 0, %s122
      %s125 = sphi 0, %s124
      %s139 = sphi 0, %s125
      %s143 = sphi 0, %s143
      %s145 = sphi 0, %s143
      %s146 = sphi 0, %s145
      %s160 = sphi 0, %s146
      %s164 = sphi 0, %s164
      %s166 = sphi 0, %s164
      %s167 = sphi 0, %s166
      %s181 = sphi 0, %s167
      %s185 = sphi 0, %s185
      %s187 = sphi 0, %s185
      %s188 = sphi 0, %s187
      %s202 = sphi 0, %s188
      %s206 = sphi 0, %s206
      %s208 = sphi 0, %s206
      %s209 = sphi 0, %s208
      %s223 = sphi 0, %s209
      %s227 = sphi 0, %s227
      %s229 = sphi 0, %s227
      %s230 = sphi 0, %s229
      %s244 = sphi 0, %s230
      %s248 = sphi 0, %s248
      %s250 = sphi 0, %s248
      %s251 = sphi 0, %s250
      %s265 = sphi 0, %s251
      %s269 = sphi 0, %s269
      %s271 = sphi 0, %s269
      %s272 = sphi 0, %s271
      %s286 = sphi 0, %s272
      %s290 = sphi 0, %s290
      %s292 = sphi 0, %s290
      %s293 = sphi 0, %s292
      %s307 = sphi 0, %s293
      %s311 = sphi 0, %s311
      %s313 = sphi 0, %s311
      %s314 = sphi 0, %s313
      %s328 = sphi 0, %s314
      %s332 = sphi 0, %s332
      %s334 = sphi 0, %s332
      %s335 = sphi 0, %s334
      %s349 = sphi 0, %s335
      %s353 = sphi 0, %s353
      %s355 = sphi 0, %s353
      %s356 = sphi 0, %s355
      %s370 = sphi 0, %s356
      %s376 = sphi 0, %s378
      %s379 = sphi 0, %s376
      %s380 = sphi 0, %s379
      %s396 = sphi 0, %s380
    $region4: #{tpu_custom_call.1} parent=1 // loop_header_branch
      %27 = sbr.rel (%p25) target = $region8
    $region5: #{tpu_custom_call.1} parent=1 // loop_body
      %s29 = ssub.s32 %s24, 1
      %s30 = ssub.s32 %s24, 2
      %s37 = sadd.s32 1, %s32
      %p38 = scmp.ge.s32.totalorder %s37, 2
      %s39 = scalar_select %p38, 0, %s37
      %s40 = sadd.s32 1, %s31
      %s41 = scalar_select %p38, %s40, %s31
      %p42 = scmp.ge.s32.totalorder %s41, 2
      %s43 = scalar_select %p42, 0, %s41
      %s44 = ssub.s32 %s31, %s43
      %p45 = scmp.eq.s32.totalorder %s44, 0
      %s47 = sadd.s32 %s46, 1
      %s48 = scalar_select %p45, %s46, %s47
      %p51 = pneg %p45
      %p52 = scmp.eq.s32.totalorder %s24, 3
      %p53 = por %p51, %p52
      %p54 = scmp.ne.s32.totalorder %s46, %s49
      %p55 = scmp.eq.s32.totalorder %s24, 0
      %p56 = por %p54, %p55
      %p57 = scmp.ne.s32.totalorder %s46, %s49
      %p58 = scmp.eq.s32.totalorder %s29, 3
      %p59 = por %p57, %p58
      %p60 = scmp.ne.s32.totalorder %s49, %s50
      %p61 = scmp.eq.s32.totalorder %s29, 0
      %p62 = por %p60, %p61
      %p63 = scmp.ne.s32.totalorder %s49, %s50
      %p64 = scmp.eq.s32.totalorder %s30, 3
      %p65 = por %p63, %p64
      %p67 = scmp.ne.s32.totalorder %s50, %s66
      %p68 = scmp.eq.s32.totalorder %s30, 0
      %p69 = por %p67, %p68
      %s70 = ssub.s32 %s31, %s43
      %p71 = scmp.eq.s32.totalorder %s70, 0
      %s73 = sadd.s32 %s72, 1
      %s74 = scalar_select %p71, %s72, %s73
      %p77 = pneg %p71
      %p78 = scmp.eq.s32.totalorder %s24, 3
      %p79 = por %p77, %p78
      %p80 = scmp.ne.s32.totalorder %s72, %s75
      %p81 = scmp.eq.s32.totalorder %s24, 0
      %p82 = por %p80, %p81
      %p83 = scmp.ne.s32.totalorder %s72, %s75
      %p84 = scmp.eq.s32.totalorder %s29, 3
      %p85 = por %p83, %p84
      %p86 = scmp.ne.s32.totalorder %s75, %s76
      %p87 = scmp.eq.s32.totalorder %s29, 0
      %p88 = por %p86, %p87
      %p89 = scmp.ne.s32.totalorder %s75, %s76
      %p90 = scmp.eq.s32.totalorder %s30, 3
      %p91 = por %p89, %p90
      %p93 = scmp.ne.s32.totalorder %s76, %s92
      %p94 = scmp.eq.s32.totalorder %s30, 0
      %p95 = por %p93, %p94
      %s96 = ssub.s32 %s31, %s43
      %p97 = scmp.eq.s32.totalorder %s96, 0
      %s99 = sadd.s32 %s98, 1
      %s100 = scalar_select %p97, %s98, %s99
      %p103 = pneg %p97
      %p104 = scmp.eq.s32.totalorder %s24, 3
      %p105 = por %p103, %p104
      %p106 = scmp.ne.s32.totalorder %s98, %s101
      %p107 = scmp.eq.s32.totalorder %s24, 0
      %p108 = por %p106, %p107
      %p109 = scmp.ne.s32.totalorder %s98, %s101
      %p110 = scmp.eq.s32.totalorder %s29, 3
      %p111 = por %p109, %p110
      %p112 = scmp.ne.s32.totalorder %s101, %s102
      %p113 = scmp.eq.s32.totalorder %s29, 0
      %p114 = por %p112, %p113
      %p115 = scmp.ne.s32.totalorder %s101, %s102
      %p116 = scmp.eq.s32.totalorder %s30, 3
      %p117 = por %p115, %p116
      %p119 = scmp.ne.s32.totalorder %s102, %s118
      %p120 = scmp.eq.s32.totalorder %s30, 0
      %p121 = por %p119, %p120
      %s123 = sadd.s32 %s122, 1
      %p126 = scmp.eq.s32.totalorder %s24, 3
      %p127 = scmp.ne.s32.totalorder %s122, %s124
      %p128 = scmp.eq.s32.totalorder %s24, 0
      %p129 = por %p127, %p128
      %p130 = scmp.ne.s32.totalorder %s122, %s124
      %p131 = scmp.eq.s32.totalorder %s29, 3
      %p132 = por %p130, %p131
      %p133 = scmp.ne.s32.totalorder %s124, %s125
      %p134 = scmp.eq.s32.totalorder %s29, 0
      %p135 = por %p133, %p134
      %p136 = scmp.ne.s32.totalorder %s124, %s125
      %p137 = scmp.eq.s32.totalorder %s30, 3
      %p138 = por %p136, %p137
      %p140 = scmp.ne.s32.totalorder %s125, %s139
      %p141 = scmp.eq.s32.totalorder %s30, 0
      %p142 = por %p140, %p141
      %s144 = sadd.s32 %s143, 1
      %p147 = scmp.eq.s32.totalorder %s24, 3
      %p148 = scmp.ne.s32.totalorder %s143, %s145
      %p149 = scmp.eq.s32.totalorder %s24, 0
      %p150 = por %p148, %p149
      %p151 = scmp.ne.s32.totalorder %s143, %s145
      %p152 = scmp.eq.s32.totalorder %s29, 3
      %p153 = por %p151, %p152
      %p154 = scmp.ne.s32.totalorder %s145, %s146
      %p155 = scmp.eq.s32.totalorder %s29, 0
      %p156 = por %p154, %p155
      %p157 = scmp.ne.s32.totalorder %s145, %s146
      %p158 = scmp.eq.s32.totalorder %s30, 3
      %p159 = por %p157, %p158
      %p161 = scmp.ne.s32.totalorder %s146, %s160
      %p162 = scmp.eq.s32.totalorder %s30, 0
      %p163 = por %p161, %p162
      %s165 = sadd.s32 %s164, 1
      %p168 = scmp.eq.s32.totalorder %s24, 3
      %p169 = scmp.ne.s32.totalorder %s164, %s166
      %p170 = scmp.eq.s32.totalorder %s24, 0
      %p171 = por %p169, %p170
      %p172 = scmp.ne.s32.totalorder %s164, %s166
      %p173 = scmp.eq.s32.totalorder %s29, 3
      %p174 = por %p172, %p173
      %p175 = scmp.ne.s32.totalorder %s166, %s167
      %p176 = scmp.eq.s32.totalorder %s29, 0
      %p177 = por %p175, %p176
      %p178 = scmp.ne.s32.totalorder %s166, %s167
      %p179 = scmp.eq.s32.totalorder %s30, 3
      %p180 = por %p178, %p179
      %p182 = scmp.ne.s32.totalorder %s167, %s181
      %p183 = scmp.eq.s32.totalorder %s30, 0
      %p184 = por %p182, %p183
      %s186 = sadd.s32 %s185, 1
      %p189 = scmp.eq.s32.totalorder %s24, 3
      %p190 = scmp.ne.s32.totalorder %s185, %s187
      %p191 = scmp.eq.s32.totalorder %s24, 0
      %p192 = por %p190, %p191
      %p193 = scmp.ne.s32.totalorder %s185, %s187
      %p194 = scmp.eq.s32.totalorder %s29, 3
      %p195 = por %p193, %p194
      %p196 = scmp.ne.s32.totalorder %s187, %s188
      %p197 = scmp.eq.s32.totalorder %s29, 0
      %p198 = por %p196, %p197
      %p199 = scmp.ne.s32.totalorder %s187, %s188
      %p200 = scmp.eq.s32.totalorder %s30, 3
      %p201 = por %p199, %p200
      %p203 = scmp.ne.s32.totalorder %s188, %s202
      %p204 = scmp.eq.s32.totalorder %s30, 0
      %p205 = por %p203, %p204
      %s207 = sadd.s32 %s206, 1
      %p210 = scmp.eq.s32.totalorder %s24, 3
      %p211 = scmp.ne.s32.totalorder %s206, %s208
      %p212 = scmp.eq.s32.totalorder %s24, 0
      %p213 = por %p211, %p212
      %p214 = scmp.ne.s32.totalorder %s206, %s208
      %p215 = scmp.eq.s32.totalorder %s29, 3
      %p216 = por %p214, %p215
      %p217 = scmp.ne.s32.totalorder %s208, %s209
      %p218 = scmp.eq.s32.totalorder %s29, 0
      %p219 = por %p217, %p218
      %p220 = scmp.ne.s32.totalorder %s208, %s209
      %p221 = scmp.eq.s32.totalorder %s30, 3
      %p222 = por %p220, %p221
      %p224 = scmp.ne.s32.totalorder %s209, %s223
      %p225 = scmp.eq.s32.totalorder %s30, 0
      %p226 = por %p224, %p225
      %s228 = sadd.s32 %s227, 1
      %p231 = scmp.eq.s32.totalorder %s24, 3
      %p232 = scmp.ne.s32.totalorder %s227, %s229
      %p233 = scmp.eq.s32.totalorder %s24, 0
      %p234 = por %p232, %p233
      %p235 = scmp.ne.s32.totalorder %s227, %s229
      %p236 = scmp.eq.s32.totalorder %s29, 3
      %p237 = por %p235, %p236
      %p238 = scmp.ne.s32.totalorder %s229, %s230
      %p239 = scmp.eq.s32.totalorder %s29, 0
      %p240 = por %p238, %p239
      %p241 = scmp.ne.s32.totalorder %s229, %s230
      %p242 = scmp.eq.s32.totalorder %s30, 3
      %p243 = por %p241, %p242
      %p245 = scmp.ne.s32.totalorder %s230, %s244
      %p246 = scmp.eq.s32.totalorder %s30, 0
      %p247 = por %p245, %p246
      %s249 = sadd.s32 %s248, 1
      %p252 = scmp.eq.s32.totalorder %s24, 3
      %p253 = scmp.ne.s32.totalorder %s248, %s250
      %p254 = scmp.eq.s32.totalorder %s24, 0
      %p255 = por %p253, %p254
      %p256 = scmp.ne.s32.totalorder %s248, %s250
      %p257 = scmp.eq.s32.totalorder %s29, 3
      %p258 = por %p256, %p257
      %p259 = scmp.ne.s32.totalorder %s250, %s251
      %p260 = scmp.eq.s32.totalorder %s29, 0
      %p261 = por %p259, %p260
      %p262 = scmp.ne.s32.totalorder %s250, %s251
      %p263 = scmp.eq.s32.totalorder %s30, 3
      %p264 = por %p262, %p263
      %p266 = scmp.ne.s32.totalorder %s251, %s265
      %p267 = scmp.eq.s32.totalorder %s30, 0
      %p268 = por %p266, %p267
      %s270 = sadd.s32 %s269, 1
      %p273 = scmp.eq.s32.totalorder %s24, 3
      %p274 = scmp.ne.s32.totalorder %s269, %s271
      %p275 = scmp.eq.s32.totalorder %s24, 0
      %p276 = por %p274, %p275
      %p277 = scmp.ne.s32.totalorder %s269, %s271
      %p278 = scmp.eq.s32.totalorder %s29, 3
      %p279 = por %p277, %p278
      %p280 = scmp.ne.s32.totalorder %s271, %s272
      %p281 = scmp.eq.s32.totalorder %s29, 0
      %p282 = por %p280, %p281
      %p283 = scmp.ne.s32.totalorder %s271, %s272
      %p284 = scmp.eq.s32.totalorder %s30, 3
      %p285 = por %p283, %p284
      %p287 = scmp.ne.s32.totalorder %s272, %s286
      %p288 = scmp.eq.s32.totalorder %s30, 0
      %p289 = por %p287, %p288
      %s291 = sadd.s32 %s290, 1
      %p294 = scmp.eq.s32.totalorder %s24, 3
      %p295 = scmp.ne.s32.totalorder %s290, %s292
      %p296 = scmp.eq.s32.totalorder %s24, 0
      %p297 = por %p295, %p296
      %p298 = scmp.ne.s32.totalorder %s290, %s292
      %p299 = scmp.eq.s32.totalorder %s29, 3
      %p300 = por %p298, %p299
      %p301 = scmp.ne.s32.totalorder %s292, %s293
      %p302 = scmp.eq.s32.totalorder %s29, 0
      %p303 = por %p301, %p302
      %p304 = scmp.ne.s32.totalorder %s292, %s293
      %p305 = scmp.eq.s32.totalorder %s30, 3
      %p306 = por %p304, %p305
      %p308 = scmp.ne.s32.totalorder %s293, %s307
      %p309 = scmp.eq.s32.totalorder %s30, 0
      %p310 = por %p308, %p309
      %s312 = sadd.s32 %s311, 1
      %p315 = scmp.eq.s32.totalorder %s24, 3
      %p316 = scmp.ne.s32.totalorder %s311, %s313
      %p317 = scmp.eq.s32.totalorder %s24, 0
      %p318 = por %p316, %p317
      %p319 = scmp.ne.s32.totalorder %s311, %s313
      %p320 = scmp.eq.s32.totalorder %s29, 3
      %p321 = por %p319, %p320
      %p322 = scmp.ne.s32.totalorder %s313, %s314
      %p323 = scmp.eq.s32.totalorder %s29, 0
      %p324 = por %p322, %p323
      %p325 = scmp.ne.s32.totalorder %s313, %s314
      %p326 = scmp.eq.s32.totalorder %s30, 3
      %p327 = por %p325, %p326
      %p329 = scmp.ne.s32.totalorder %s314, %s328
      %p330 = scmp.eq.s32.totalorder %s30, 0
      %p331 = por %p329, %p330
      %s333 = sadd.s32 %s332, 1
      %p336 = scmp.eq.s32.totalorder %s24, 3
      %p337 = scmp.ne.s32.totalorder %s332, %s334
      %p338 = scmp.eq.s32.totalorder %s24, 0
      %p339 = por %p337, %p338
      %p340 = scmp.ne.s32.totalorder %s332, %s334
      %p341 = scmp.eq.s32.totalorder %s29, 3
      %p342 = por %p340, %p341
      %p343 = scmp.ne.s32.totalorder %s334, %s335
      %p344 = scmp.eq.s32.totalorder %s29, 0
      %p345 = por %p343, %p344
      %p346 = scmp.ne.s32.totalorder %s334, %s335
      %p347 = scmp.eq.s32.totalorder %s30, 3
      %p348 = por %p346, %p347
      %p350 = scmp.ne.s32.totalorder %s335, %s349
      %p351 = scmp.eq.s32.totalorder %s30, 0
      %p352 = por %p350, %p351
      %s354 = sadd.s32 %s353, 1
      %p357 = scmp.eq.s32.totalorder %s24, 3
      %p358 = scmp.ne.s32.totalorder %s353, %s355
      %p359 = scmp.eq.s32.totalorder %s24, 0
      %p360 = por %p358, %p359
      %p361 = scmp.ne.s32.totalorder %s353, %s355
      %p362 = scmp.eq.s32.totalorder %s29, 3
      %p363 = por %p361, %p362
      %p364 = scmp.ne.s32.totalorder %s355, %s356
      %p365 = scmp.eq.s32.totalorder %s29, 0
      %p366 = por %p364, %p365
      %p367 = scmp.ne.s32.totalorder %s355, %s356
      %p368 = scmp.eq.s32.totalorder %s30, 3
      %p369 = por %p367, %p368
      %p371 = scmp.ne.s32.totalorder %s356, %s370
      %p372 = scmp.eq.s32.totalorder %s30, 0
      %p373 = por %p371, %p372
      %s374 = ssub.s32 %s31, %s43
      %p375 = scmp.eq.s32.totalorder %s374, 0
      %s377 = sadd.s32 %s376, 1
      %s378 = scalar_select %p375, %s376, %s377
      %p381 = pneg %p375
      %p382 = scmp.eq.s32.totalorder %s24, 3
      %p383 = por %p381, %p382
      %p384 = scmp.ne.s32.totalorder %s376, %s379
      %p385 = scmp.eq.s32.totalorder %s24, 0
      %p386 = por %p384, %p385
      %p387 = scmp.ne.s32.totalorder %s376, %s379
      %p388 = scmp.eq.s32.totalorder %s29, 3
      %p389 = por %p387, %p388
      %p390 = scmp.ne.s32.totalorder %s379, %s380
      %p391 = scmp.eq.s32.totalorder %s29, 0
      %p392 = por %p390, %p391
      %p393 = scmp.ne.s32.totalorder %s379, %s380
      %p394 = scmp.eq.s32.totalorder %s30, 3
      %p395 = por %p393, %p394
      %p397 = scmp.ne.s32.totalorder %s380, %s396
      %p398 = scmp.eq.s32.totalorder %s30, 0
      %p399 = por %p397, %p398
      %p400 = scmp.le.s32.totalorder 1, %s24
      %p401 = scmp.lt.s32.totalorder %s24, 5
      %p402 = pnand %p400, %p401
      %p403 = pneg %p402
      // Predicated region
      $region9: #{tpu_custom_call.1} parent=5 // pred_check
        _
      $region10: #{tpu_custom_call.1} parent=5 // pred_check_branch
        %405 = sbr.rel (%p402) target = $region12
      $region11: #{tpu_custom_call.1} parent=5 // pred_region
        %s406 = ssub.s32 %s24, 1
        // Predicated region
        $region13: #{tpu_custom_call.1} parent=11 // pred_check
          %p407 = pneg %p135
        $region14: #{tpu_custom_call.1} parent=11 // pred_check_branch
          %409 = sbr.rel (%p407) target = $region16
        $region15: #{tpu_custom_call.1} parent=11 // pred_region
          _
        $region16: #{tpu_custom_call.1} parent=11 // pred_fallthru
          _
        // Predicated region
        $region17: #{tpu_custom_call.1} parent=11 // pred_check
          %p410 = pneg %p156
        $region18: #{tpu_custom_call.1} parent=11 // pred_check_branch
          %412 = sbr.rel (%p410) target = $region20
        $region19: #{tpu_custom_call.1} parent=11 // pred_region
          _
        $region20: #{tpu_custom_call.1} parent=11 // pred_fallthru
          _
        // Predicated region
        $region21: #{tpu_custom_call.1} parent=11 // pred_check
          %p413 = pneg %p177
        $region22: #{tpu_custom_call.1} parent=11 // pred_check_branch
          %415 = sbr.rel (%p413) target = $region24
        $region23: #{tpu_custom_call.1} parent=11 // pred_region
          _
        $region24: #{tpu_custom_call.1} parent=11 // pred_fallthru
          _
        // Predicated region
        $region25: #{tpu_custom_call.1} parent=11 // pred_check
          %p416 = pneg %p198
        $region26: #{tpu_custom_call.1} parent=11 // pred_check_branch
          %418 = sbr.rel (%p416) target = $region28
        $region27: #{tpu_custom_call.1} parent=11 // pred_region
          _
        $region28: #{tpu_custom_call.1} parent=11 // pred_fallthru
          _
        // Predicated region
        $region29: #{tpu_custom_call.1} parent=11 // pred_check
          %p419 = pneg %p219
        $region30: #{tpu_custom_call.1} parent=11 // pred_check_branch
          %421 = sbr.rel (%p419) target = $region32
        $region31: #{tpu_custom_call.1} parent=11 // pred_region
          _
        $region32: #{tpu_custom_call.1} parent=11 // pred_fallthru
          _
        // Predicated region
        $region33: #{tpu_custom_call.1} parent=11 // pred_check
          %p422 = pneg %p240
        $region34: #{tpu_custom_call.1} parent=11 // pred_check_branch
          %424 = sbr.rel (%p422) target = $region36
        $region35: #{tpu_custom_call.1} parent=11 // pred_region
          _
        $region36: #{tpu_custom_call.1} parent=11 // pred_fallthru
          _
        // Predicated region
        $region37: #{tpu_custom_call.1} parent=11 // pred_check
          %p425 = pneg %p261
        $region38: #{tpu_custom_call.1} parent=11 // pred_check_branch
          %427 = sbr.rel (%p425) target = $region40
        $region39: #{tpu_custom_call.1} parent=11 // pred_region
          _
        $region40: #{tpu_custom_call.1} parent=11 // pred_fallthru
          _
        // Predicated region
        $region41: #{tpu_custom_call.1} parent=11 // pred_check
          %p428 = pneg %p282
        $region42: #{tpu_custom_call.1} parent=11 // pred_check_branch
          %430 = sbr.rel (%p428) target = $region44
        $region43: #{tpu_custom_call.1} parent=11 // pred_region
          _
        $region44: #{tpu_custom_call.1} parent=11 // pred_fallthru
          _
        // Predicated region
        $region45: #{tpu_custom_call.1} parent=11 // pred_check
          %p431 = pneg %p303
        $region46: #{tpu_custom_call.1} parent=11 // pred_check_branch
          %433 = sbr.rel (%p431) target = $region48
        $region47: #{tpu_custom_call.1} parent=11 // pred_region
          _
        $region48: #{tpu_custom_call.1} parent=11 // pred_fallthru
          _
        // Predicated region
        $region49: #{tpu_custom_call.1} parent=11 // pred_check
          %p434 = pneg %p324
        $region50: #{tpu_custom_call.1} parent=11 // pred_check_branch
          %436 = sbr.rel (%p434) target = $region52
        $region51: #{tpu_custom_call.1} parent=11 // pred_region
          _
        $region52: #{tpu_custom_call.1} parent=11 // pred_fallthru
          _
        // Predicated region
        $region53: #{tpu_custom_call.1} parent=11 // pred_check
          %p437 = pneg %p345
        $region54: #{tpu_custom_call.1} parent=11 // pred_check_branch
          %439 = sbr.rel (%p437) target = $region56
        $region55: #{tpu_custom_call.1} parent=11 // pred_region
          _
        $region56: #{tpu_custom_call.1} parent=11 // pred_fallthru
          _
        // Predicated region
        $region57: #{tpu_custom_call.1} parent=11 // pred_check
          %p440 = pneg %p366
        $region58: #{tpu_custom_call.1} parent=11 // pred_check_branch
          %442 = sbr.rel (%p440) target = $region60
        $region59: #{tpu_custom_call.1} parent=11 // pred_region
          _
        $region60: #{tpu_custom_call.1} parent=11 // pred_fallthru
          _
      $region12: #{tpu_custom_call.1} parent=5 // pred_fallthru
        _
      %p443 = scmp.lt.s32.totalorder %s24, 4
      // Predicated region
      $region61: #{tpu_custom_call.1} parent=5 // pred_check
        %p444 = pneg %p443
      $region62: #{tpu_custom_call.1} parent=5 // pred_check_branch
        %446 = sbr.rel (%p444) target = $region64
      $region63: #{tpu_custom_call.1} parent=5 // pred_region
        // Predicated region
        $region65: #{tpu_custom_call.1} parent=63 // pred_check
          %p447 = pneg %p56
        $region66: #{tpu_custom_call.1} parent=63 // pred_check_branch
          %449 = sbr.rel (%p447) target = $region68
        $region67: #{tpu_custom_call.1} parent=63 // pred_region
          %p450 = scmp.lt.s32.totalorder %s31, 1
          %s451 = scalar_select %p450, %s31, 1
          %s452 = smul.addr %s451, 2
          %s453 = smul.addr %s452, 8
          %s454 = scalar_lea.vmem %s0, %s453
        $region68: #{tpu_custom_call.1} parent=63 // pred_fallthru
          _
        // Predicated region
        $region69: #{tpu_custom_call.1} parent=63 // pred_check
          %p455 = pneg %p82
        $region70: #{tpu_custom_call.1} parent=63 // pred_check_branch
          %457 = sbr.rel (%p455) target = $region72
        $region71: #{tpu_custom_call.1} parent=63 // pred_region
          %p458 = scmp.lt.s32.totalorder %s31, 1
          %s459 = scalar_select %p458, %s31, 1
          %s460 = smul.addr %s459, 2
          %s461 = smul.addr %s460, 8
          %s462 = scalar_lea.vmem %s1, %s461
        $region72: #{tpu_custom_call.1} parent=63 // pred_fallthru
          _
        // Predicated region
        $region73: #{tpu_custom_call.1} parent=63 // pred_check
          %p463 = pneg %p108
        $region74: #{tpu_custom_call.1} parent=63 // pred_check_branch
          %465 = sbr.rel (%p463) target = $region76
        $region75: #{tpu_custom_call.1} parent=63 // pred_region
          %p466 = scmp.lt.s32.totalorder %s31, 1
          %s467 = scalar_select %p466, %s31, 1
          %s468 = smul.addr %s467, 2
          %s469 = smul.addr %s468, 8
          %s470 = scalar_lea.vmem %s2, %s469
        $region76: #{tpu_custom_call.1} parent=63 // pred_fallthru
          _
      $region64: #{tpu_custom_call.1} parent=5 // pred_fallthru
        _
      %p471 = scmp.le.s32.totalorder 1, %s24
      %p472 = scmp.lt.s32.totalorder %s24, 5
      %p473 = pnand %p471, %p472
      %p474 = pneg %p473
      // Predicated region
      $region77: #{tpu_custom_call.1} parent=5 // pred_check
        _
      $region78: #{tpu_custom_call.1} parent=5 // pred_check_branch
        %476 = sbr.rel (%p473) target = $region80
      $region79: #{tpu_custom_call.1} parent=5 // pred_region
        %s477 = ssub.s32 %s24, 1
        %p478 = scmp.lt.s32.totalorder %s33, 1
        %s479 = scalar_select %p478, %s33, 1
        %s480 = smul.addr %s479, 2
        %s481 = smul.addr %s480, 8
        %s482 = scalar_lea.vmem %s0, %s481
        %p483 = pneg %p62
        %p484 = pneg %p59
        %p485 = scmp.lt.s32.totalorder %s33, 1
        %s486 = scalar_select %p485, %s33, 1
        %s487 = smul.addr %s486, 2
        %s488 = smul.addr %s487, 8
        %s489 = scalar_lea.vmem %s1, %s488
        %p490 = pneg %p88
        %p491 = pneg %p85
        %p492 = scmp.lt.s32.totalorder %s33, 1
        %s493 = scalar_select %p492, %s33, 1
        %s494 = smul.addr %s493, 2
        %s495 = smul.addr %s494, 8
        %s496 = scalar_lea.vmem %s2, %s495
        %p497 = pneg %p114
        %p498 = pneg %p111
        %p499 = pneg %p135
        %p500 = pneg %p132
        %p501 = pneg %p156
        %p502 = pneg %p153
        %p503 = pneg %p177
        %p504 = pneg %p174
        %p505 = pneg %p198
        %p506 = pneg %p195
        %p507 = pneg %p219
        %p508 = pneg %p216
        %p509 = pneg %p240
        %p510 = pneg %p237
        %p511 = pneg %p261
        %p512 = pneg %p258
        %p513 = pneg %p282
        %p514 = pneg %p279
        %p515 = pneg %p303
        %p516 = pneg %p300
        %p517 = pneg %p324
        %p518 = pneg %p321
        %p519 = pneg %p345
        %p520 = pneg %p342
        %p521 = pneg %p366
        %p522 = pneg %p363
        %p523 = pneg %p392
        %p524 = pneg %p389
        %s525 = sand.u32 %s379, 1
        %s526 = scalar_lea.sflag [#allocation3], %s525
        %s527 = sand.u32 %s379, 1
        %s528 = smul.addr %s527, 16
        %s529 = scalar_lea.vmem [#allocation2], %s528
        %p530 = scmp.lt.s32.totalorder %s33, 1
        %s531 = scalar_select %p530, %s33, 1
        %s532 = smul.addr %s531, 2
        %s533 = smul.addr %s532, 8
        %s534 = scalar_lea.vmem %s0, %s533
        %p535 = scmp.lt.s32.totalorder %s33, 1
        %s536 = scalar_select %p535, %s33, 1
        %s537 = smul.addr %s536, 2
        %s538 = smul.addr %s537, 8
        %s539 = scalar_lea.vmem %s1, %s538
        %p540 = scmp.lt.s32.totalorder %s33, 1
        %s541 = scalar_select %p540, %s33, 1
        %s542 = smul.addr %s541, 2
        %s543 = smul.addr %s542, 8
        %s544 = scalar_lea.vmem %s2, %s543
        %p546 = scmp.eq.s32.totalorder %s34, 0
        // Predicated region
        $region81: #{tpu_custom_call.1} parent=79 // pred_check
          %p547 = pneg %p546
        $region82: #{tpu_custom_call.1} parent=79 // pred_check_branch
          %549 = sbr.rel (%p547) target = $region84
        $region83: #{tpu_custom_call.1} parent=79 // pred_region
          %v550 = vld [vmem:[%s534] sm:$0xff]
          %v551 = vld [vmem:[%s534 + $0x8] sm:$0xff]
          %vm552 = vcmask 261120
          %553 = vst.msk [vmem:[%s529] sm:$0xff] %vm552, %v550
          %554 = vst.msk [vmem:[%s529 + $0x8] sm:$0xff] %vm552, %v551
        $region84: #{tpu_custom_call.1} parent=79 // pred_fallthru
          _
        %v555 = vld [vmem:[%s529] sm:$0xff]
        %v556 = vld [vmem:[%s529 + $0x8] sm:$0xff]
        %v557 = vld [vmem:[%s539] sm:$0xff]
        %v558 = vld [vmem:[%s539 + $0x8] sm:$0xff]
        %v559 = vadd.f32 %v555, %v557
        %v560 = vadd.f32 %v556, %v558
        %s561 = scalar_lea.vmem %s3, %s34
        %v562 = vld [vmem:[%s561] sm:$0x1]
        %s563 = scalar_lea.vmem %s4, %s34
        %v564 = vld [vmem:[%s563] sm:$0x1]
        %vm565 = vcmask 261120
        %v566 = vsel %vm565, %v559, 0.0
        %567 = vadd.xlane.f32.xlu0 %v566
        %v568 = vpop.xlane.xlu0 %567
        %v569 = vsel %vm565, %v560, 0.0
        %570 = vadd.xlane.f32.xlu0 %v569
        %v571 = vpop.xlane.xlu0 %570
        %v572 = vrcp.pop 32.0
        %v573 = vmul.f32 %v568, %v572
        %v574 = vmul.f32 %v571, %v572
        %v575 = vmul.f32 %v559, %v559
        %v576 = vmul.f32 %v560, %v560
        %v577 = vsel %vm565, %v575, 0.0
        %578 = vadd.xlane.f32.xlu0 %v577
        %v579 = vpop.xlane.xlu0 %578
        %v580 = vsel %vm565, %v576, 0.0
        %581 = vadd.xlane.f32.xlu0 %v580
        %v582 = vpop.xlane.xlu0 %581
        %v583 = vmul.f32 %v579, %v572
        %v584 = vmul.f32 %v582, %v572
        %v585 = vmul.f32 %v573, %v573
        %v586 = vmul.f32 %v574, %v574
        %v587 = vsub.f32 %v583, %v585
        %v588 = vsub.f32 %v584, %v586
        %v589 = vsub.f32 %v559, %v573
        %v590 = vsub.f32 %v560, %v574
        %v591 = vadd.f32 %v587, 1e-05
        %v592 = vadd.f32 %v588, 1e-05
        %v593 = vrsqrt.pop %v591
        %v594 = vrsqrt.pop %v592
        %v595 = vmul.f32 %v589, %v593
        %v596 = vmul.f32 %v590, %v594
        %v598 = vlaneseq
        %v599 = vshrl.u32 %v598, 7
        %v600 = vsub.s32 0, %v599
        %v601 = vrot.slane %v562, %v600
        %v603 = vmul.f32 %v595, %v601
        %v604 = vmul.f32 %v596, %v601
        %v606 = vlaneseq
        %v607 = vshrl.u32 %v606, 7
        %v608 = vsub.s32 0, %v607
        %v609 = vrot.slane %v564, %v608
        %v611 = vadd.f32 %v603, %v609
        %v612 = vadd.f32 %v604, %v609
        %v613 = vpack.c.bf16 %v612, %v611
        %s614 = smul.u32 %s34, 8
        %s615 = smul.addr %s614, 4
        %s616 = scalar_lea.vmem %s5, %s615
        %v617 = vld [vmem:[%s616] sm:$0xff]
        %v618 = vld [vmem:[%s616 + $0x8] sm:$0xff]
        %v619 = vld [vmem:[%s616 + $0x10] sm:$0xff]
        %v620 = vld [vmem:[%s616 + $0x18] sm:$0xff]
        %v625 = vunpack.c.l.b16 %v617
        %v626 = vunpack.c.h.b16 %v617
        %v627 = vunpack.c.l.b16 %v618
        %v628 = vunpack.c.h.b16 %v618
        %v629 = vunpack.c.l.b16 %v619
        %v630 = vunpack.c.h.b16 %v619
        %v631 = vunpack.c.l.b16 %v620
        %v632 = vunpack.c.h.b16 %v620
        %v633 = vpack.c.b16 %v627, %v625
        %v634 = vpack.c.b16 %v628, %v626
        %v635 = vpack.c.b16 %v631, %v629
        %v636 = vpack.c.b16 %v632, %v630
        %v642 = vsel %vm565, %v613, 0
        %644 = vmatprep.subr.bf16.mxu0 %v634
        %645 = vmatpush1.bf16.msra.mxu0 %v633
        %646 = vmatprep.subr.bf16.mxu0 %v636
        %647 = vmatpush1.bf16.msra.mxu0 %v635
        %648 = vmatprep.subr.bf16.mxu0 0
        %649 = vmatpush1.bf16.msra.mxu0 0
        %650 = vmatprep.subr.bf16.mxu0 0
        %651 = vmatpush1.bf16.msra.mxu0 0
        %652 = vmatprep.subr.bf16.mxu0 0
        %653 = vmatpush1.bf16.msra.mxu0 0
        %654 = vmatprep.subr.bf16.mxu0 0
        %655 = vmatpush1.bf16.msra.mxu0 0
        %656 = vmatprep.subr.bf16.mxu0 0
        %657 = vmatpush1.bf16.msra.mxu0 0
        %658 = vmatprep.subr.bf16.mxu0 0
        %659 = vmatpush1.bf16.msra.mxu0 0
        %660 = vmatprep.subr.bf16.mxu0 0
        %661 = vmatpush1.bf16.msra.mxu0 0
        %662 = vmatprep.subr.bf16.mxu0 0
        %663 = vmatpush1.bf16.msra.mxu0 0
        %664 = vmatprep.subr.bf16.mxu0 0
        %665 = vmatpush1.bf16.msra.mxu0 0
        %666 = vmatprep.subr.bf16.mxu0 0
        %667 = vmatpush1.bf16.msra.mxu0 0
        %668 = vmatprep.subr.bf16.mxu0 0
        %669 = vmatpush1.bf16.msra.mxu0 0
        %670 = vmatprep.subr.bf16.mxu0 0
        %671 = vmatpush1.bf16.msra.mxu0 0
        %672 = vmatprep.subr.bf16.mxu0 0
        %673 = vmatpush1.bf16.msra.mxu0 0
        %674 = vmatprep.subr.bf16.mxu0 0
        %675 = vmatpush1.bf16.msra.mxu0 0
        %676 = vmatprep.mubr.bf16.mxu0 0
        %677 = vmatmul.mubr.bf16.gmra.mrb[0].mxu0 %v642
        %v678 = vpop.f32.mrb[0].mxu0
        %v679 = vadd.f32 0.0, %v678
        %v680 = vpop.f32.mrb[0].mxu0
        %v681 = vadd.f32 0.0, %v680
        %v682 = vpop.f32.mrb[0].mxu0
        %v683 = vadd.f32 0.0, %v682
        %v684 = vpop.f32.mrb[0].mxu0
        %v685 = vadd.f32 0.0, %v684
        %686 = vdwg.mxu0
        %v687 = vpack.c.bf16 %v683, %v679
        %s688 = scalar_lea.vmem %s6, %s34
        %v689 = vld [vmem:[%s688] sm:$0x1]
        %v691 = vlaneseq
        %v692 = vshrl.u32 %v691, 7
        %v693 = vsub.s32 0, %v692
        %v694 = vrot.slane %v689, %v693
        %v696 = vadd.f32 %v681, %v694
        %v697 = vadd.f32 %v685, %v694
        %v698 = vld [vmem:[%s544] sm:$0xff]
        %v699 = vld [vmem:[%s544 + $0x8] sm:$0xff]
        %v700 = vlaneseq
        %v701 = vand.u32 %v700, 127
        %702 = vset.pattern.permute.xlu0 0
        %703 = vperm.xlu0 %702, %v698
        %v704 = vpop.permute.xlu0 %703
        %705 = vset.pattern.permute.xlu0 0
        %706 = vperm.xlu0 %705, %v699
        %v707 = vpop.permute.xlu0 %706
        %vm708 = vcmp.eq.s32.totalorder %v704, %v701
        %vm709 = vcmp.eq.s32.totalorder %v707, %v701
        %v710 = vsel %vm708, 1, 0
        %v711 = vsel %vm709, 1, 0
        %v712 = vcvt.s32.f32 %v710
        %v713 = vcvt.s32.f32 %v711
        %v714 = vpack.c.bf16 %v713, %v712
        %vm715 = vcmask 130048
        %v717 = vsel %vm715, %v714, 0
        %719 = vmatprep.subr.bf16.mxu0 0
        %720 = vmatpush1.bf16.msra.mxu0 %v687
        %721 = vmatprep.subr.bf16.mxu0 0
        %722 = vmatpush1.bf16.msra.mxu0 0
        %723 = vmatprep.subr.bf16.mxu0 0
        %724 = vmatpush1.bf16.msra.mxu0 0
        %725 = vmatprep.subr.bf16.mxu0 0
        %726 = vmatpush1.bf16.msra.mxu0 0
        %727 = vmatprep.subr.bf16.mxu0 0
        %728 = vmatpush1.bf16.msra.mxu0 0
        %729 = vmatprep.subr.bf16.mxu0 0
        %730 = vmatpush1.bf16.msra.mxu0 0
        %731 = vmatprep.subr.bf16.mxu0 0
        %732 = vmatpush1.bf16.msra.mxu0 0
        %733 = vmatprep.subr.bf16.mxu0 0
        %734 = vmatpush1.bf16.msra.mxu0 0
        %735 = vmatprep.subr.bf16.mxu0 0
        %736 = vmatpush1.bf16.msra.mxu0 0
        %737 = vmatprep.subr.bf16.mxu0 0
        %738 = vmatpush1.bf16.msra.mxu0 0
        %739 = vmatprep.subr.bf16.mxu0 0
        %740 = vmatpush1.bf16.msra.mxu0 0
        %741 = vmatprep.subr.bf16.mxu0 0
        %742 = vmatpush1.bf16.msra.mxu0 0
        %743 = vmatprep.subr.bf16.mxu0 0
        %744 = vmatpush1.bf16.msra.mxu0 0
        %745 = vmatprep.subr.bf16.mxu0 0
        %746 = vmatpush1.bf16.msra.mxu0 0
        %747 = vmatprep.subr.bf16.mxu0 0
        %748 = vmatpush1.bf16.msra.mxu0 0
        %749 = vmatprep.subr.bf16.mxu0 0
        %750 = vmatpush1.bf16.msra.mxu0 0
        %751 = vmatprep.mubr.bf16.mxu0 0
        %752 = vmatmul.mubr.bf16.gmra.mrb[0].mxu0 %v717
        %v753 = vpop.f32.mrb[0].mxu0
        %v754 = vadd.f32 0.0, %v753
        %v755 = vpop.f32.mrb[0].mxu0
        %v756 = vpop.f32.mrb[0].mxu0
        %v757 = vadd.f32 0.0, %v756
        %v758 = vpop.f32.mrb[0].mxu0
        %759 = vdwg.mxu0
        %760 = vset.pattern.permute.xlu0 1
        %761 = vperm.xlu0 %760, %v698
        %v762 = vpop.permute.xlu0 %761
        %763 = vset.pattern.permute.xlu0 1
        %764 = vperm.xlu0 %763, %v699
        %v765 = vpop.permute.xlu0 %764
        %vm766 = vcmp.eq.s32.totalorder %v762, %v701
        %vm767 = vcmp.eq.s32.totalorder %v765, %v701
        %v768 = vsel %vm766, 1, 0
        %v769 = vsel %vm767, 1, 0
        %v770 = vcvt.s32.f32 %v768
        %v771 = vcvt.s32.f32 %v769
        %v772 = vpack.c.bf16 %v771, %v770
        %v774 = vsel %vm715, %v772, 0
        %776 = vmatprep.subr.bf16.mxu0 0
        %777 = vmatpush1.bf16.msra.mxu0 %v687
        %778 = vmatprep.subr.bf16.mxu0 0
        %779 = vmatpush1.bf16.msra.mxu0 0
        %780 = vmatprep.subr.bf16.mxu0 0
        %781 = vmatpush1.bf16.msra.mxu0 0
        %782 = vmatprep.subr.bf16.mxu0 0
        %783 = vmatpush1.bf16.msra.mxu0 0
        %784 = vmatprep.subr.bf16.mxu0 0
        %785 = vmatpush1.bf16.msra.mxu0 0
        %786 = vmatprep.subr.bf16.mxu0 0
        %787 = vmatpush1.bf16.msra.mxu0 0
        %788 = vmatprep.subr.bf16.mxu0 0
        %789 = vmatpush1.bf16.msra.mxu0 0
        %790 = vmatprep.subr.bf16.mxu0 0
        %791 = vmatpush1.bf16.msra.mxu0 0
        %792 = vmatprep.subr.bf16.mxu0 0
        %793 = vmatpush1.bf16.msra.mxu0 0
        %794 = vmatprep.subr.bf16.mxu0 0
        %795 = vmatpush1.bf16.msra.mxu0 0
        %796 = vmatprep.subr.bf16.mxu0 0
        %797 = vmatpush1.bf16.msra.mxu0 0
        %798 = vmatprep.subr.bf16.mxu0 0
        %799 = vmatpush1.bf16.msra.mxu0 0
        %800 = vmatprep.subr.bf16.mxu0 0
        %801 = vmatpush1.bf16.msra.mxu0 0
        %802 = vmatprep.subr.bf16.mxu0 0
        %803 = vmatpush1.bf16.msra.mxu0 0
        %804 = vmatprep.subr.bf16.mxu0 0
        %805 = vmatpush1.bf16.msra.mxu0 0
        %806 = vmatprep.subr.bf16.mxu0 0
        %807 = vmatpush1.bf16.msra.mxu0 0
        %808 = vmatprep.mubr.bf16.mxu0 0
        %809 = vmatmul.mubr.bf16.gmra.mrb[0].mxu0 %v774
        %v810 = vpop.f32.mrb[0].mxu0
        %v811 = vadd.f32 0.0, %v810
        %v812 = vpop.f32.mrb[0].mxu0
        %v813 = vpop.f32.mrb[0].mxu0
        %v814 = vadd.f32 0.0, %v813
        %v815 = vpop.f32.mrb[0].mxu0
        %816 = vdwg.mxu0
        %v817 = vmax.f32 %v754, %v811
        %v818 = vmax.f32 %v757, %v814
        %819 = vset.pattern.permute.xlu0 2
        %820 = vperm.xlu0 %819, %v698
        %v821 = vpop.permute.xlu0 %820
        %822 = vset.pattern.permute.xlu0 2
        %823 = vperm.xlu0 %822, %v699
        %v824 = vpop.permute.xlu0 %823
        %vm825 = vcmp.eq.s32.totalorder %v821, %v701
        %vm826 = vcmp.eq.s32.totalorder %v824, %v701
        %v827 = vsel %vm825, 1, 0
        %v828 = vsel %vm826, 1, 0
        %v829 = vcvt.s32.f32 %v827
        %v830 = vcvt.s32.f32 %v828
        %v831 = vpack.c.bf16 %v830, %v829
        %v833 = vsel %vm715, %v831, 0
        %835 = vmatprep.subr.bf16.mxu0 0
        %836 = vmatpush1.bf16.msra.mxu0 %v687
        %837 = vmatprep.subr.bf16.mxu0 0
        %838 = vmatpush1.bf16.msra.mxu0 0
        %839 = vmatprep.subr.bf16.mxu0 0
        %840 = vmatpush1.bf16.msra.mxu0 0
        %841 = vmatprep.subr.bf16.mxu0 0
        %842 = vmatpush1.bf16.msra.mxu0 0
        %843 = vmatprep.subr.bf16.mxu0 0
        %844 = vmatpush1.bf16.msra.mxu0 0
        %845 = vmatprep.subr.bf16.mxu0 0
        %846 = vmatpush1.bf16.msra.mxu0 0
        %847 = vmatprep.subr.bf16.mxu0 0
        %848 = vmatpush1.bf16.msra.mxu0 0
        %849 = vmatprep.subr.bf16.mxu0 0
        %850 = vmatpush1.bf16.msra.mxu0 0
        %851 = vmatprep.subr.bf16.mxu0 0
        %852 = vmatpush1.bf16.msra.mxu0 0
        %853 = vmatprep.subr.bf16.mxu0 0
        %854 = vmatpush1.bf16.msra.mxu0 0
        %855 = vmatprep.subr.bf16.mxu0 0
        %856 = vmatpush1.bf16.msra.mxu0 0
        %857 = vmatprep.subr.bf16.mxu0 0
        %858 = vmatpush1.bf16.msra.mxu0 0
        %859 = vmatprep.subr.bf16.mxu0 0
        %860 = vmatpush1.bf16.msra.mxu0 0
        %861 = vmatprep.subr.bf16.mxu0 0
        %862 = vmatpush1.bf16.msra.mxu0 0
        %863 = vmatprep.subr.bf16.mxu0 0
        %864 = vmatpush1.bf16.msra.mxu0 0
        %865 = vmatprep.subr.bf16.mxu0 0
        %866 = vmatpush1.bf16.msra.mxu0 0
        %867 = vmatprep.mubr.bf16.mxu0 0
        %868 = vmatmul.mubr.bf16.gmra.mrb[0].mxu0 %v833
        %v869 = vpop.f32.mrb[0].mxu0
        %v870 = vadd.f32 0.0, %v869
        %v871 = vpop.f32.mrb[0].mxu0
        %v872 = vpop.f32.mrb[0].mxu0
        %v873 = vadd.f32 0.0, %v872
        %v874 = vpop.f32.mrb[0].mxu0
        %875 = vdwg.mxu0
        %v876 = vmax.f32 %v817, %v870
        %v877 = vmax.f32 %v818, %v873
        %878 = vset.pattern.permute.xlu0 3
        %879 = vperm.xlu0 %878, %v698
        %v880 = vpop.permute.xlu0 %879
        %881 = vset.pattern.permute.xlu0 3
        %882 = vperm.xlu0 %881, %v699
        %v883 = vpop.permute.xlu0 %882
        %vm884 = vcmp.eq.s32.totalorder %v880, %v701
        %vm885 = vcmp.eq.s32.totalorder %v883, %v701
        %v886 = vsel %vm884, 1, 0
        %v887 = vsel %vm885, 1, 0
        %v888 = vcvt.s32.f32 %v886
        %v889 = vcvt.s32.f32 %v887
        %v890 = vpack.c.bf16 %v889, %v888
        %v892 = vsel %vm715, %v890, 0
        %894 = vmatprep.subr.bf16.mxu0 0
        %895 = vmatpush1.bf16.msra.mxu0 %v687
        %896 = vmatprep.subr.bf16.mxu0 0
        %897 = vmatpush1.bf16.msra.mxu0 0
        %898 = vmatprep.subr.bf16.mxu0 0
        %899 = vmatpush1.bf16.msra.mxu0 0
        %900 = vmatprep.subr.bf16.mxu0 0
        %901 = vmatpush1.bf16.msra.mxu0 0
        %902 = vmatprep.subr.bf16.mxu0 0
        %903 = vmatpush1.bf16.msra.mxu0 0
        %904 = vmatprep.subr.bf16.mxu0 0
        %905 = vmatpush1.bf16.msra.mxu0 0
        %906 = vmatprep.subr.bf16.mxu0 0
        %907 = vmatpush1.bf16.msra.mxu0 0
        %908 = vmatprep.subr.bf16.mxu0 0
        %909 = vmatpush1.bf16.msra.mxu0 0
        %910 = vmatprep.subr.bf16.mxu0 0
        %911 = vmatpush1.bf16.msra.mxu0 0
        %912 = vmatprep.subr.bf16.mxu0 0
        %913 = vmatpush1.bf16.msra.mxu0 0
        %914 = vmatprep.subr.bf16.mxu0 0
        %915 = vmatpush1.bf16.msra.mxu0 0
        %916 = vmatprep.subr.bf16.mxu0 0
        %917 = vmatpush1.bf16.msra.mxu0 0
        %918 = vmatprep.subr.bf16.mxu0 0
        %919 = vmatpush1.bf16.msra.mxu0 0
        %920 = vmatprep.subr.bf16.mxu0 0
        %921 = vmatpush1.bf16.msra.mxu0 0
        %922 = vmatprep.subr.bf16.mxu0 0
        %923 = vmatpush1.bf16.msra.mxu0 0
        %924 = vmatprep.subr.bf16.mxu0 0
        %925 = vmatpush1.bf16.msra.mxu0 0
        %926 = vmatprep.mubr.bf16.mxu0 0
        %927 = vmatmul.mubr.bf16.gmra.mrb[0].mxu0 %v892
        %v928 = vpop.f32.mrb[0].mxu0
        %v929 = vadd.f32 0.0, %v928
        %v930 = vpop.f32.mrb[0].mxu0
        %v931 = vpop.f32.mrb[0].mxu0
        %v932 = vadd.f32 0.0, %v931
        %v933 = vpop.f32.mrb[0].mxu0
        %934 = vdwg.mxu0
        %v935 = vmax.f32 %v876, %v929
        %v936 = vmax.f32 %v877, %v932
        %v937 = vadd.f32 %v935, %v696
        %v938 = vadd.f32 %v936, %v697
        %vm939 = vcmp.gt.f32.partialorder %v937, 0.0
        %vm940 = vcmp.gt.f32.partialorder %v938, 0.0
        %v941 = vmul.f32 %v937, 0.2
        %v942 = vmul.f32 %v938, 0.2
        %v943 = vsel %vm939, %v937, %v941
        %v944 = vsel %vm940, %v938, %v942
        %v945 = vpack.c.bf16 %v944, %v943
        %s946 = smul.u32 %s34, 16
        %s947 = smul.addr %s946, 4
        %s948 = scalar_lea.vmem %s7, %s947
        %v949 = vld [vmem:[%s948] sm:$0xf]
        %v950 = vld [vmem:[%s948 + $0x4] sm:$0xf]
        %v951 = vld [vmem:[%s948 + $0x8] sm:$0xf]
        %v952 = vld [vmem:[%s948 + $0xc] sm:$0xf]
        %v953 = vld [vmem:[%s948 + $0x10] sm:$0xf]
        %v954 = vld [vmem:[%s948 + $0x14] sm:$0xf]
        %v955 = vld [vmem:[%s948 + $0x18] sm:$0xf]
        %v956 = vld [vmem:[%s948 + $0x1c] sm:$0xf]
        %v957 = vld [vmem:[%s948 + $0x20] sm:$0xf]
        %v958 = vld [vmem:[%s948 + $0x24] sm:$0xf]
        %v959 = vld [vmem:[%s948 + $0x28] sm:$0xf]
        %v960 = vld [vmem:[%s948 + $0x2c] sm:$0xf]
        %v961 = vld [vmem:[%s948 + $0x30] sm:$0xf]
        %v962 = vld [vmem:[%s948 + $0x34] sm:$0xf]
        %v963 = vld [vmem:[%s948 + $0x38] sm:$0xf]
        %v964 = vld [vmem:[%s948 + $0x3c] sm:$0xf]
        %s965 = scalar_lea.vmem %s8, %s34
        %v966 = vld [vmem:[%s965] sm:$0x1]
        %v968 = vlaneseq
        %v969 = vshrl.u32 %v968, 7
        %v970 = vsub.s32 0, %v969
        %v971 = vrot.slane %v966, %v970
        %v989 = vunpack.c.l.b16 %v949
        %v990 = vunpack.c.l.b16 %v950
        %v991 = vunpack.c.l.b16 %v951
        %v992 = vunpack.c.l.b16 %v952
        %v993 = vunpack.c.l.b16 %v953
        %v994 = vunpack.c.l.b16 %v954
        %v995 = vunpack.c.l.b16 %v955
        %v996 = vunpack.c.l.b16 %v956
        %v997 = vunpack.c.l.b16 %v957
        %v998 = vunpack.c.l.b16 %v958
        %v999 = vunpack.c.l.b16 %v959
        %v1000 = vunpack.c.l.b16 %v960
        %v1001 = vunpack.c.l.b16 %v961
        %v1002 = vunpack.c.l.b16 %v962
        %v1003 = vunpack.c.l.b16 %v963
        %v1004 = vunpack.c.l.b16 %v964
        %v1005 = vpack.c.b16 %v990, %v989
        %v1006 = vpack.c.b16 %v992, %v991
        %v1007 = vpack.c.b16 %v994, %v993
        %v1008 = vpack.c.b16 %v996, %v995
        %v1009 = vpack.c.b16 %v998, %v997
        %v1010 = vpack.c.b16 %v1000, %v999
        %v1011 = vpack.c.b16 %v1002, %v1001
        %v1012 = vpack.c.b16 %v1004, %v1003
        %1021 = vmatprep.subr.bf16.mxu0 0
        %1022 = vmatpush1.bf16.msra.mxu0 %v1005
        %1023 = vmatprep.subr.bf16.mxu0 0
        %1024 = vmatpush1.bf16.msra.mxu0 %v1006
        %1025 = vmatprep.subr.bf16.mxu0 0
        %1026 = vmatpush1.bf16.msra.mxu0 %v1007
        %1027 = vmatprep.subr.bf16.mxu0 0
        %1028 = vmatpush1.bf16.msra.mxu0 %v1008
        %1029 = vmatprep.subr.bf16.mxu0 0
        %1030 = vmatpush1.bf16.msra.mxu0 %v1009
        %1031 = vmatprep.subr.bf16.mxu0 0
        %1032 = vmatpush1.bf16.msra.mxu0 %v1010
        %1033 = vmatprep.subr.bf16.mxu0 0
        %1034 = vmatpush1.bf16.msra.mxu0 %v1011
        %1035 = vmatprep.subr.bf16.mxu0 0
        %1036 = vmatpush1.bf16.msra.mxu0 %v1012
        %1037 = vmatprep.subr.bf16.mxu0 0
        %1038 = vmatpush1.bf16.msra.mxu0 0
        %1039 = vmatprep.subr.bf16.mxu0 0
        %1040 = vmatpush1.bf16.msra.mxu0 0
        %1041 = vmatprep.subr.bf16.mxu0 0
        %1042 = vmatpush1.bf16.msra.mxu0 0
        %1043 = vmatprep.subr.bf16.mxu0 0
        %1044 = vmatpush1.bf16.msra.mxu0 0
        %1045 = vmatprep.subr.bf16.mxu0 0
        %1046 = vmatpush1.bf16.msra.mxu0 0
        %1047 = vmatprep.subr.bf16.mxu0 0
        %1048 = vmatpush1.bf16.msra.mxu0 0
        %1049 = vmatprep.subr.bf16.mxu0 0
        %1050 = vmatpush1.bf16.msra.mxu0 0
        %1051 = vmatprep.subr.bf16.mxu0 0
        %1052 = vmatpush1.bf16.msra.mxu0 0
        %1053 = vmatprep.mubr.bf16.mxu0 0
        %1054 = vmatmul.mubr.bf16.gmra.mrb[0].mxu0 %v945
        %v1055 = vpop.f32.mrb[0].mxu0
        %v1056 = vadd.f32 %v971, %v1055
        %v1057 = vpop.f32.mrb[0].mxu0
        %v1058 = vpop.f32.mrb[0].mxu0
        %v1059 = vadd.f32 %v971, %v1058
        %v1060 = vpop.f32.mrb[0].mxu0
        %1061 = vdwg.mxu0
        %vm1062 = vcmp.gt.f32.partialorder %v1056, 0.0
        %vm1063 = vcmp.gt.f32.partialorder %v1059, 0.0
        %v1064 = vmul.f32 %v1056, 0.2
        %v1065 = vmul.f32 %v1059, 0.2
        %v1066 = vsel %vm1062, %v1056, %v1064
        %v1067 = vsel %vm1063, %v1059, %v1065
        %v1068 = vadd.f32 %v559, %v1066
        %v1069 = vadd.f32 %v560, %v1067
        %s1070 = scalar_lea.vmem %s9, %s34
        %v1071 = vld [vmem:[%s1070] sm:$0x1]
        %s1072 = scalar_lea.vmem %s10, %s34
        %v1073 = vld [vmem:[%s1072] sm:$0x1]
        %v1074 = vsel %vm565, %v1068, 0.0
        %1075 = vadd.xlane.f32.xlu0 %v1074
        %v1076 = vpop.xlane.xlu0 %1075
        %v1077 = vsel %vm565, %v1069, 0.0
        %1078 = vadd.xlane.f32.xlu0 %v1077
        %v1079 = vpop.xlane.xlu0 %1078
        %v1080 = vmul.f32 %v1076, %v572
        %v1081 = vmul.f32 %v1079, %v572
        %v1082 = vmul.f32 %v1068, %v1068
        %v1083 = vmul.f32 %v1069, %v1069
        %v1084 = vsel %vm565, %v1082, 0.0
        %1085 = vadd.xlane.f32.xlu0 %v1084
        %v1086 = vpop.xlane.xlu0 %1085
        %v1087 = vsel %vm565, %v1083, 0.0
        %1088 = vadd.xlane.f32.xlu0 %v1087
        %v1089 = vpop.xlane.xlu0 %1088
        %v1090 = vmul.f32 %v1086, %v572
        %v1091 = vmul.f32 %v1089, %v572
        %v1092 = vmul.f32 %v1080, %v1080
        %v1093 = vmul.f32 %v1081, %v1081
        %v1094 = vsub.f32 %v1090, %v1092
        %v1095 = vsub.f32 %v1091, %v1093
        %v1096 = vsub.f32 %v1068, %v1080
        %v1097 = vsub.f32 %v1069, %v1081
        %v1098 = vadd.f32 %v1094, 1e-05
        %v1099 = vadd.f32 %v1095, 1e-05
        %v1100 = vrsqrt.pop %v1098
        %v1101 = vrsqrt.pop %v1099
        %v1102 = vmul.f32 %v1096, %v1100
        %v1103 = vmul.f32 %v1097, %v1101
        %v1105 = vlaneseq
        %v1106 = vshrl.u32 %v1105, 7
        %v1107 = vsub.s32 0, %v1106
        %v1108 = vrot.slane %v1071, %v1107
        %v1110 = vmul.f32 %v1102, %v1108
        %v1111 = vmul.f32 %v1103, %v1108
        %v1113 = vlaneseq
        %v1114 = vshrl.u32 %v1113, 7
        %v1115 = vsub.s32 0, %v1114
        %v1116 = vrot.slane %v1073, %v1115
        %v1118 = vadd.f32 %v1110, %v1116
        %v1119 = vadd.f32 %v1111, %v1116
        %v1120 = vpack.c.bf16 %v1119, %v1118
        %s1121 = smul.u32 %s34, 4
        %s1122 = smul.addr %s1121, 4
        %s1123 = scalar_lea.vmem %s11, %s1122
        %v1124 = vld [vmem:[%s1123] sm:$0xf]
        %v1125 = vld [vmem:[%s1123 + $0x4] sm:$0xf]
        %v1126 = vld [vmem:[%s1123 + $0x8] sm:$0xf]
        %v1127 = vld [vmem:[%s1123 + $0xc] sm:$0xf]
        %s1128 = scalar_lea.vmem %s12, %s34
        %v1129 = vld [vmem:[%s1128] sm:$0x1]
        %v1131 = vlaneseq
        %v1132 = vshrl.u32 %v1131, 7
        %v1133 = vsub.s32 0, %v1132
        %v1134 = vrot.slane %v1129, %v1133
        %v1140 = vunpack.c.l.b16 %v1124
        %v1141 = vunpack.c.l.b16 %v1125
        %v1142 = vunpack.c.l.b16 %v1126
        %v1143 = vunpack.c.l.b16 %v1127
        %v1144 = vpack.c.b16 %v1141, %v1140
        %v1145 = vpack.c.b16 %v1143, %v1142
        %v1149 = vsel %vm565, %v1120, 0
        %1151 = vmatprep.subr.bf16.mxu0 0
        %1152 = vmatpush1.bf16.msra.mxu0 %v1144
        %1153 = vmatprep.subr.bf16.mxu0 0
        %1154 = vmatpush1.bf16.msra.mxu0 %v1145
        %1155 = vmatprep.subr.bf16.mxu0 0
        %1156 = vmatpush1.bf16.msra.mxu0 0
        %1157 = vmatprep.subr.bf16.mxu0 0
        %1158 = vmatpush1.bf16.msra.mxu0 0
        %1159 = vmatprep.subr.bf16.mxu0 0
        %1160 = vmatpush1.bf16.msra.mxu0 0
        %1161 = vmatprep.subr.bf16.mxu0 0
        %1162 = vmatpush1.bf16.msra.mxu0 0
        %1163 = vmatprep.subr.bf16.mxu0 0
        %1164 = vmatpush1.bf16.msra.mxu0 0
        %1165 = vmatprep.subr.bf16.mxu0 0
        %1166 = vmatpush1.bf16.msra.mxu0 0
        %1167 = vmatprep.subr.bf16.mxu0 0
        %1168 = vmatpush1.bf16.msra.mxu0 0
        %1169 = vmatprep.subr.bf16.mxu0 0
        %1170 = vmatpush1.bf16.msra.mxu0 0
        %1171 = vmatprep.subr.bf16.mxu0 0
        %1172 = vmatpush1.bf16.msra.mxu0 0
        %1173 = vmatprep.subr.bf16.mxu0 0
        %1174 = vmatpush1.bf16.msra.mxu0 0
        %1175 = vmatprep.subr.bf16.mxu0 0
        %1176 = vmatpush1.bf16.msra.mxu0 0
        %1177 = vmatprep.subr.bf16.mxu0 0
        %1178 = vmatpush1.bf16.msra.mxu0 0
        %1179 = vmatprep.subr.bf16.mxu0 0
        %1180 = vmatpush1.bf16.msra.mxu0 0
        %1181 = vmatprep.subr.bf16.mxu0 0
        %1182 = vmatpush1.bf16.msra.mxu0 0
        %1183 = vmatprep.mubr.bf16.mxu0 0
        %1184 = vmatmul.mubr.bf16.gmra.mrb[0].mxu0 %v1149
        %v1185 = vpop.f32.mrb[0].mxu0
        %v1186 = vadd.f32 %v1134, %v1185
        %v1187 = vpop.f32.mrb[0].mxu0
        %v1188 = vpop.f32.mrb[0].mxu0
        %v1189 = vadd.f32 %v1134, %v1188
        %v1190 = vpop.f32.mrb[0].mxu0
        %1191 = vdwg.mxu0
        %v1192 = vmul.f32 %v1186, 0.5
        %v1193 = vmul.f32 %v1189, 0.5
        %v1194 = vmul.f32 %v1186, 0.70710677
        %v1195 = vmul.f32 %v1189, 0.70710677
        %v1196 = verf.f32.pop %v1194
        %v1197 = verf.f32.pop %v1195
        %v1198 = vadd.f32 %v1196, 1.0
        %v1199 = vadd.f32 %v1197, 1.0
        %v1200 = vmul.f32 %v1192, %v1198
        %v1201 = vmul.f32 %v1193, %v1199
        %v1202 = vpack.c.bf16 %v1201, %v1200
        %s1203 = smul.addr %s946, 4
        %s1204 = scalar_lea.vmem %s13, %s1203
        %v1205 = vld [vmem:[%s1204] sm:$0xf]
        %v1206 = vld [vmem:[%s1204 + $0x4] sm:$0xf]
        %v1207 = vld [vmem:[%s1204 + $0x8] sm:$0xf]
        %v1208 = vld [vmem:[%s1204 + $0xc] sm:$0xf]
        %v1209 = vld [vmem:[%s1204 + $0x10] sm:$0xf]
        %v1210 = vld [vmem:[%s1204 + $0x14] sm:$0xf]
        %v1211 = vld [vmem:[%s1204 + $0x18] sm:$0xf]
        %v1212 = vld [vmem:[%s1204 + $0x1c] sm:$0xf]
        %v1213 = vld [vmem:[%s1204 + $0x20] sm:$0xf]
        %v1214 = vld [vmem:[%s1204 + $0x24] sm:$0xf]
        %v1215 = vld [vmem:[%s1204 + $0x28] sm:$0xf]
        %v1216 = vld [vmem:[%s1204 + $0x2c] sm:$0xf]
        %v1217 = vld [vmem:[%s1204 + $0x30] sm:$0xf]
        %v1218 = vld [vmem:[%s1204 + $0x34] sm:$0xf]
        %v1219 = vld [vmem:[%s1204 + $0x38] sm:$0xf]
        %v1220 = vld [vmem:[%s1204 + $0x3c] sm:$0xf]
        %s1221 = scalar_lea.vmem %s14, %s34
        %v1222 = vld [vmem:[%s1221] sm:$0x1]
        %v1224 = vlaneseq
        %v1225 = vshrl.u32 %v1224, 7
        %v1226 = vsub.s32 0, %v1225
        %v1227 = vrot.slane %v1222, %v1226
        %v1245 = vunpack.c.l.b16 %v1205
        %v1246 = vunpack.c.l.b16 %v1206
        %v1247 = vunpack.c.l.b16 %v1207
        %v1248 = vunpack.c.l.b16 %v1208
        %v1249 = vunpack.c.l.b16 %v1209
        %v1250 = vunpack.c.l.b16 %v1210
        %v1251 = vunpack.c.l.b16 %v1211
        %v1252 = vunpack.c.l.b16 %v1212
        %v1253 = vunpack.c.l.b16 %v1213
        %v1254 = vunpack.c.l.b16 %v1214
        %v1255 = vunpack.c.l.b16 %v1215
        %v1256 = vunpack.c.l.b16 %v1216
        %v1257 = vunpack.c.l.b16 %v1217
        %v1258 = vunpack.c.l.b16 %v1218
        %v1259 = vunpack.c.l.b16 %v1219
        %v1260 = vunpack.c.l.b16 %v1220
        %v1261 = vpack.c.b16 %v1246, %v1245
        %v1262 = vpack.c.b16 %v1248, %v1247
        %v1263 = vpack.c.b16 %v1250, %v1249
        %v1264 = vpack.c.b16 %v1252, %v1251
        %v1265 = vpack.c.b16 %v1254, %v1253
        %v1266 = vpack.c.b16 %v1256, %v1255
        %v1267 = vpack.c.b16 %v1258, %v1257
        %v1268 = vpack.c.b16 %v1260, %v1259
        %1277 = vmatprep.subr.bf16.mxu0 0
        %1278 = vmatpush1.bf16.msra.mxu0 %v1261
        %1279 = vmatprep.subr.bf16.mxu0 0
        %1280 = vmatpush1.bf16.msra.mxu0 %v1262
        %1281 = vmatprep.subr.bf16.mxu0 0
        %1282 = vmatpush1.bf16.msra.mxu0 %v1263
        %1283 = vmatprep.subr.bf16.mxu0 0
        %1284 = vmatpush1.bf16.msra.mxu0 %v1264
        %1285 = vmatprep.subr.bf16.mxu0 0
        %1286 = vmatpush1.bf16.msra.mxu0 %v1265
        %1287 = vmatprep.subr.bf16.mxu0 0
        %1288 = vmatpush1.bf16.msra.mxu0 %v1266
        %1289 = vmatprep.subr.bf16.mxu0 0
        %1290 = vmatpush1.bf16.msra.mxu0 %v1267
        %1291 = vmatprep.subr.bf16.mxu0 0
        %1292 = vmatpush1.bf16.msra.mxu0 %v1268
        %1293 = vmatprep.subr.bf16.mxu0 0
        %1294 = vmatpush1.bf16.msra.mxu0 0
        %1295 = vmatprep.subr.bf16.mxu0 0
        %1296 = vmatpush1.bf16.msra.mxu0 0
        %1297 = vmatprep.subr.bf16.mxu0 0
        %1298 = vmatpush1.bf16.msra.mxu0 0
        %1299 = vmatprep.subr.bf16.mxu0 0
        %1300 = vmatpush1.bf16.msra.mxu0 0
        %1301 = vmatprep.subr.bf16.mxu0 0
        %1302 = vmatpush1.bf16.msra.mxu0 0
        %1303 = vmatprep.subr.bf16.mxu0 0
        %1304 = vmatpush1.bf16.msra.mxu0 0
        %1305 = vmatprep.subr.bf16.mxu0 0
        %1306 = vmatpush1.bf16.msra.mxu0 0
        %1307 = vmatprep.subr.bf16.mxu0 0
        %1308 = vmatpush1.bf16.msra.mxu0 0
        %1309 = vmatprep.mubr.bf16.mxu0 0
        %1310 = vmatmul.mubr.bf16.gmra.mrb[0].mxu0 %v1202
        %v1311 = vpop.f32.mrb[0].mxu0
        %v1312 = vadd.f32 %v1227, %v1311
        %v1313 = vpop.f32.mrb[0].mxu0
        %v1314 = vpop.f32.mrb[0].mxu0
        %v1315 = vadd.f32 %v1227, %v1314
        %v1316 = vpop.f32.mrb[0].mxu0
        %1317 = vdwg.mxu0
        %v1318 = vadd.f32 %v1068, %v1312
        %v1319 = vadd.f32 %v1069, %v1315
        %1320 = vst.msk [vmem:[%s529] sm:$0xff] %vm565, %v1318
        %1321 = vst.msk [vmem:[%s529 + $0x8] sm:$0xff] %vm565, %v1319
        %s1322 = sand.u32 %s379, 1
        %s1323 = scalar_lea.sflag [#allocation3], %s1322
        %s1324 = sand.u32 %s379, 1
        %s1325 = smul.addr %s1324, 16
        %s1326 = scalar_lea.vmem [#allocation2], %s1325
        // Predicated region
        $region85: #{tpu_custom_call.1} parent=79 // pred_check
          %p1327 = pneg %p389
        $region86: #{tpu_custom_call.1} parent=79 // pred_check_branch
          %1329 = sbr.rel (%p1327) target = $region88
        $region87: #{tpu_custom_call.1} parent=79 // pred_region
          %s1331 = ssub.s32 256, 256
          %1332 = vsyncadd %s1323, %s1331
          %s1333 = smul.addr %s33, 2
          %s1334 = smul.addr %s1333, 128
          %s1335 = scalar_lea.hbm %s15, %s1334
          %s1336 = sshll.u32 %s1326, 4
          %s1337 = int_to_ptr.vmem [resolvable:$true] %s1336
          %1342 = dma.vmem_to_hbm [thread:$0]  %s1337, 256, %s1335, %s1323, 128, 128, 8
        $region88: #{tpu_custom_call.1} parent=79 // pred_fallthru
          _
      $region80: #{tpu_custom_call.1} parent=5 // pred_fallthru
        _
      %p1343 = scmp.le.s32.totalorder 2, %s24
      // Predicated region
      $region89: #{tpu_custom_call.1} parent=5 // pred_check
        %p1344 = pneg %p1343
      $region90: #{tpu_custom_call.1} parent=5 // pred_check_branch
        %1346 = sbr.rel (%p1344) target = $region92
      $region91: #{tpu_custom_call.1} parent=5 // pred_region
        %s1347 = ssub.s32 %s24, 2
        // Predicated region
        $region93: #{tpu_custom_call.1} parent=91 // pred_check
          %p1348 = pneg %p395
        $region94: #{tpu_custom_call.1} parent=91 // pred_check_branch
          %1350 = sbr.rel (%p1348) target = $region96
        $region95: #{tpu_custom_call.1} parent=91 // pred_region
          %s1351 = sand.u32 %s380, 1
          %s1352 = scalar_lea.sflag [#allocation3], %s1351
          %s1353 = sand.u32 %s380, 1
          %s1354 = smul.addr %s1353, 16
          %s1355 = scalar_lea.vmem [#allocation2], %s1354
          %1356 = dma.done %s1352, 256
        $region96: #{tpu_custom_call.1} parent=91 // pred_fallthru
          _
      $region92: #{tpu_custom_call.1} parent=5 // pred_fallthru
        _
    $region6: #{tpu_custom_call.1} parent=1 // loop_footer
      %s28 = sadd.s32 1, %s24
    $region7: #{tpu_custom_call.1} parent=1 // loop_footer_branch
      %23 = sbr.rel target = $region3
    $region8: #{tpu_custom_call.1} parent=1 // loop_exit
      _
    %1357 = vsyncpa [#allocation3], 1
    %s1358 = scalar_lea.sflag [#allocation3], 1
    %1359 = vsyncpa %s1358, 1

</llo_original>
